<compile_context>
chip_gen: v6e
topology: v6e:2x2x1
jax: 0.10.0
libtpu: 0.0.40
codegen_flags: <defaults>
</compile_context>

<pallas_src>
import jax
import jax.numpy as jnp
from jax.experimental import pallas as pl
from jax.experimental.pallas import tpu as pltpu


def _round_up(n, m):
    return ((n + m - 1) // m) * m


# ---------------------------------------------------------------------------
# Kernels
# ---------------------------------------------------------------------------

def _downsample_conv_kernel(x_ref, w_ref, b_ref, o_ref, slab_ref):
    """Fused pad + 3x3/stride-2 conv + bias for one batch element.

    x_ref   : (1, Hop, 2, Wop, 2*Cp)  free-reshaped zero-padded input (bf16)
    w_ref   : (9*Cp, Np)              reshaped HWIO weights (bf16)
    b_ref   : (1, Np)                 f32 bias
    o_ref   : (1, Ho, Wo, Np)         bf16 output
    slab_ref: (Ho*Wo, 9*Cp)           VMEM im2col scratch (bf16)

    Padded-input pixel (2i+dy, 2j+dx, c) lives at
        x_ref[0, i + dy//2, dy%2, j + dx//2, (dx%2)*Cp + c]
    so every tap is a contiguous static slice.  The 9 taps are packed
    side-by-side along lanes, giving a single MXU matmul with K = 9*Cp.
    """
    _, Ho, Wo, Np = o_ref.shape
    Cp = x_ref.shape[-1] // 2

    # NOTE: Wo should be a multiple of 8 (sublane) to keep the reshapes and
    # the dy/dx==2 offset slices relayout-free; true for the shapes used here.
    for dy in range(3):
        hi, hp = dy // 2, dy % 2
        for dx in range(3):
            wi, wp = dx // 2, dx % 2
            tap = x_ref[0, pl.ds(hi, Ho), hp, pl.ds(wi, Wo), pl.ds(wp * Cp, Cp)]
            k = dy * 3 + dx
            slab_ref[:, pl.ds(k * Cp, Cp)] = tap.reshape(Ho * Wo, Cp)

    acc = jnp.dot(slab_ref[...], w_ref[...], preferred_element_type=jnp.float32)
    o_ref[0] = (acc + b_ref[...]).reshape(Ho, Wo, Np).astype(o_ref.dtype)


def _downsample_pool_kernel(x_ref, o_ref):
    """2x2 / stride-2 average pool for one batch element.

    x_ref: (1, Ho, 2, Wo, 2*Cp)  free-reshaped input
    o_ref: (1, Ho, Wo, Cp)
    """
    _, Ho, Wo, Cp = o_ref.shape
    s = jnp.zeros((Ho, Wo, Cp), jnp.float32)        # f32 accumulation
    for p in range(2):
        for q in range(2):
            s = s + x_ref[0, :, p, :, pl.ds(q * Cp, Cp)].astype(jnp.float32)
    o_ref[0] = (s * 0.25).astype(o_ref.dtype)


# ---------------------------------------------------------------------------
# Wrappers (NHWC)
# ---------------------------------------------------------------------------

def downsample_conv(x, w, b, *, compute_dtype=jnp.bfloat16,
                    out_dtype=jnp.bfloat16):
    """x: (B,H,W,C) NHWC; w: (3,3,C,Cout) HWIO; b: (Cout,).
    torch pad (0,1,0,1) then conv 3x3 / stride 2 / pad 0.
    Returns (B, Ho, Wo, Cout) in out_dtype (f32 accumulation inside)."""
    B, H, W, C = x.shape
    kh, kw, Cin_w, Cout = w.shape
    assert (kh, kw) == (3, 3) and Cin_w == C
    Ho = (H - 2) // 2 + 1            # == ((H+1) - 3)//2 + 1
    Wo = (W - 2) // 2 + 1
    Hop, Wop = Ho + 1, Wo + 1

    Cp = _round_up(C, 128)           # lane-dense in-channels (zeros add 0)
    Np = _round_up(Cout, 128)        # lane-dense out-channels (sliced off)

    # One fused pass: bf16 cast FIRST, then a single pad covering the torch
    # (0,1,0,1) spatial pad, the even-extent round-up and the channel pad.
    xp = jnp.pad(x.astype(compute_dtype),
                 ((0, 0), (0, 2 * Hop - H), (0, 2 * Wop - W), (0, Cp - C)))
    # Free (contiguous) reshape -- NO HBM transpose.
    xr = xp.reshape(B, Hop, 2, Wop, 2 * Cp)

    w2 = jnp.pad(w, ((0, 0), (0, 0), (0, Cp - C), (0, Np - Cout)))
    w2 = w2.astype(compute_dtype).reshape(9 * Cp, Np)        # free reshape
    b2 = jnp.pad(b, (0, Np - Cout)).reshape(1, Np).astype(jnp.float32)

    out = pl.pallas_call(
        _downsample_conv_kernel,
        out_shape=jax.ShapeDtypeStruct((B, Ho, Wo, Np), out_dtype),
        grid=(B,),
        in_specs=[
            pl.BlockSpec((1, Hop, 2, Wop, 2 * Cp),
                         lambda bb: (bb, 0, 0, 0, 0)),
            pl.BlockSpec((9 * Cp, Np), lambda bb: (0, 0),
                         pipeline_mode=pl.Buffered(1)),     # grid-invariant
            pl.BlockSpec((1, Np), lambda bb: (0, 0),
                         pipeline_mode=pl.Buffered(1)),      # grid-invariant
        ],
        out_specs=pl.BlockSpec((1, Ho, Wo, Np), lambda bb: (bb, 0, 0, 0)),
        scratch_shapes=[pltpu.VMEM((Ho * Wo, 9 * Cp), compute_dtype)],
        compiler_params=pltpu.CompilerParams(
            dimension_semantics=("parallel",),
            vmem_limit_bytes=32 * 1024 * 1024,
        ),
    )(xr, w2, b2)
    return out[..., :Cout] if Np != Cout else out


def downsample_avgpool(x):
    """x: (B,H,W,C) NHWC with even H, W.  Returns (B, H//2, W//2, C)."""
    B, H, W, C = x.shape
    # TODO(synk): odd H/W (torch avg_pool2d floors the extra row/col) unsupported.
    assert H % 2 == 0 and W % 2 == 0
    Ho, Wo = H // 2, W // 2
    Cp = _round_up(C, 128)           # lane-dense output stores
    xp = x if Cp == C else jnp.pad(x, ((0, 0), (0, 0), (0, 0), (0, Cp - C)))
    xr = xp.reshape(B, Ho, 2, Wo, 2 * Cp)          # free reshape, no transpose
    out = pl.pallas_call(
        _downsample_pool_kernel,
        out_shape=jax.ShapeDtypeStruct((B, Ho, Wo, Cp), x.dtype),
        grid=(B,),
        in_specs=[pl.BlockSpec((1, Ho, 2, Wo, 2 * Cp),
                               lambda bb: (bb, 0, 0, 0, 0))],
        out_specs=pl.BlockSpec((1, Ho, Wo, Cp), lambda bb: (bb, 0, 0, 0)),
        compiler_params=pltpu.CompilerParams(dimension_semantics=("parallel",)),
    )(xr)
    return out[..., :C] if Cp != C else out


def downsample(x_nchw, *, with_conv, w=None, b=None):
    """Torch-layout wrapper of Downsample.forward: NCHW in / NCHW out.

    w is HWIO (3,3,C,C); a torch OIHW weight maps via w_t.permute(2,3,1,0).
    NHWC pipelines should call downsample_conv / downsample_avgpool directly
    and skip these two boundary transposes.
    """
    x = jnp.transpose(x_nchw, (0, 2, 3, 1))        # NCHW -> NHWC
    if with_conv:
        y = downsample_conv(x, w, b)
    else:
        y = downsample_avgpool(x)
    return jnp.transpose(y, (0, 3, 1, 2))          # NHWC -> NCHW


# ---------------------------------------------------------------------------

if __name__ == "__main__":
    # Small but lane-dense shapes: batch=2, channels=128, spatial=16x16.
    B, C, H, W = 2, 128, 16, 16
    key = jax.random.PRNGKey(0)
    kx, kw, kb = jax.random.split(key, 3)
    x_nchw = jax.random.normal(kx, (B, C, H, W), jnp.float32)
    w = 0.1 * jax.random.normal(kw, (3, 3, C, C), jnp.float32)   # HWIO
    b = 0.02 * jax.random.normal(kb, (C,), jnp.float32)

    y_conv = downsample(x_nchw, with_conv=True, w=w, b=b)
    y_pool = downsample(x_nchw, with_conv=False)
    jax.block_until_ready((y_conv, y_pool))

    assert y_conv.shape == (B, C, H // 2, W // 2)
    assert y_pool.shape == (B, C, H // 2, W // 2)

    # References.  Conv contract: bf16 inputs, f32 accumulation, bf16 output
    # (so tolerance covers ~half a bf16 ulp at the output magnitudes).
    x_nhwc = jnp.transpose(x_nchw, (0, 2, 3, 1))
    xp = jnp.pad(x_nhwc, ((0, 0), (0, 1), (0, 1), (0, 0)))
    ref_conv = jax.lax.conv_general_dilated(
        xp.astype(jnp.bfloat16), w.astype(jnp.bfloat16),
        window_strides=(2, 2), padding="VALID",
        dimension_numbers=("NHWC", "HWIO", "NHWC"),
        preferred_element_type=jnp.float32) + b
    ref_pool = x_nhwc.reshape(B, H // 2, 2, W // 2, 2, C).mean(axis=(2, 4))
    ref_conv = jnp.transpose(ref_conv, (0, 3, 1, 2))
    ref_pool = jnp.transpose(ref_pool, (0, 3, 1, 2))

    conv_err = float(jnp.max(jnp.abs(y_conv.astype(jnp.float32) - ref_conv)))
    pool_err = float(jnp.max(jnp.abs(y_pool - ref_pool)))
    assert conv_err < 1e-1, conv_err
    assert pool_err < 1e-5, pool_err
    print("KERNEL_OK")
</pallas_src>

<mosaic_0001>
module attributes {stable_mosaic.version = 11 : i64} {
  func.func @_downsample_conv_kernel(%arg0: i32, %arg1: memref<1x9x2x9x256xbf16, #tpu.memory_space<vmem>>, %arg2: memref<1152x128xbf16, #tpu.memory_space<vmem>>, %arg3: memref<1x128xf32, #tpu.memory_space<vmem>>, %arg4: memref<1x8x8x128xbf16, #tpu.memory_space<vmem>>, %arg5: memref<64x1152xbf16, #tpu.memory_space<vmem>>) attributes {dimension_semantics = [#tpu.dimension_semantics<parallel>], iteration_bounds = array<i64: 2>, scalar_prefetch = 0 : i64, scratch_operands = 1 : i64, tpu.core_type = #tpu.core_type<tc>, window_params = [{transform_indices = @transform_0, window_bounds = array<i64: 1, 9, 2, 9, 256>}, {pipeline_mode = #tpu.pipeline_mode<synchronous>, transform_indices = @transform_1, window_bounds = array<i64: 1152, 128>}, {pipeline_mode = #tpu.pipeline_mode<synchronous>, transform_indices = @transform_2, window_bounds = array<i64: 1, 128>}, {transform_indices = @transform_3, window_bounds = array<i64: 1, 8, 8, 128>}]} {
    %c0 = arith.constant 0 : index
    %c0_0 = arith.constant 0 : index
    %c0_1 = arith.constant 0 : index
    %c0_2 = arith.constant 0 : index
    %c0_3 = arith.constant 0 : index
    %0 = vector.load %arg1[%c0, %c0_0, %c0_1, %c0_2, %c0_3] : memref<1x9x2x9x256xbf16, #tpu.memory_space<vmem>>, vector<1x8x1x8x128xbf16>
    %1 = vector.shape_cast %0 : vector<1x8x1x8x128xbf16> to vector<8x8x128xbf16>
    %2 = vector.shape_cast %1 : vector<8x8x128xbf16> to vector<64x128xbf16>
    %c0_4 = arith.constant 0 : index
    %c0_5 = arith.constant 0 : index
    %3 = vector.load %arg5[%c0_4, %c0_5] : memref<64x1152xbf16, #tpu.memory_space<vmem>>, vector<64x128xbf16>
    tpu.vector_store %arg5[%c0_4, %c0_5], %2 {strides = array<i32>} : memref<64x1152xbf16, #tpu.memory_space<vmem>>, vector<64x128xbf16>,
    %c0_6 = arith.constant 0 : index
    %c0_7 = arith.constant 0 : index
    %c0_8 = arith.constant 0 : index
    %c0_9 = arith.constant 0 : index
    %c128 = arith.constant 128 : index
    %4 = vector.load %arg1[%c0_6, %c0_7, %c0_8, %c0_9, %c128] : memref<1x9x2x9x256xbf16, #tpu.memory_space<vmem>>, vector<1x8x1x8x128xbf16>
    %5 = vector.shape_cast %4 : vector<1x8x1x8x128xbf16> to vector<8x8x128xbf16>
    %6 = vector.shape_cast %5 : vector<8x8x128xbf16> to vector<64x128xbf16>
    %c0_10 = arith.constant 0 : index
    %c128_11 = arith.constant 128 : index
    %7 = vector.load %arg5[%c0_10, %c128_11] : memref<64x1152xbf16, #tpu.memory_space<vmem>>, vector<64x128xbf16>
    tpu.vector_store %arg5[%c0_10, %c128_11], %6 {strides = array<i32>} : memref<64x1152xbf16, #tpu.memory_space<vmem>>, vector<64x128xbf16>,
    %c0_12 = arith.constant 0 : index
    %c0_13 = arith.constant 0 : index
    %c0_14 = arith.constant 0 : index
    %c1 = arith.constant 1 : index
    %c0_15 = arith.constant 0 : index
    %8 = vector.load %arg1[%c0_12, %c0_13, %c0_14, %c1, %c0_15] : memref<1x9x2x9x256xbf16, #tpu.memory_space<vmem>>, vector<1x8x1x8x128xbf16>
    %9 = vector.shape_cast %8 : vector<1x8x1x8x128xbf16> to vector<8x8x128xbf16>
    %10 = vector.shape_cast %9 : vector<8x8x128xbf16> to vector<64x128xbf16>
    %c0_16 = arith.constant 0 : index
    %c256 = arith.constant 256 : index
    %11 = vector.load %arg5[%c0_16, %c256] : memref<64x1152xbf16, #tpu.memory_space<vmem>>, vector<64x128xbf16>
    tpu.vector_store %arg5[%c0_16, %c256], %10 {strides = array<i32>} : memref<64x1152xbf16, #tpu.memory_space<vmem>>, vector<64x128xbf16>,
    %c0_17 = arith.constant 0 : index
    %c0_18 = arith.constant 0 : index
    %c1_19 = arith.constant 1 : index
    %c0_20 = arith.constant 0 : index
    %c0_21 = arith.constant 0 : index
    %12 = vector.load %arg1[%c0_17, %c0_18, %c1_19, %c0_20, %c0_21] : memref<1x9x2x9x256xbf16, #tpu.memory_space<vmem>>, vector<1x8x1x8x128xbf16>
    %13 = vector.shape_cast %12 : vector<1x8x1x8x128xbf16> to vector<8x8x128xbf16>
    %14 = vector.shape_cast %13 : vector<8x8x128xbf16> to vector<64x128xbf16>
    %c0_22 = arith.constant 0 : index
    %c384 = arith.constant 384 : index
    %15 = vector.load %arg5[%c0_22, %c384] : memref<64x1152xbf16, #tpu.memory_space<vmem>>, vector<64x128xbf16>
    tpu.vector_store %arg5[%c0_22, %c384], %14 {strides = array<i32>} : memref<64x1152xbf16, #tpu.memory_space<vmem>>, vector<64x128xbf16>,
    %c0_23 = arith.constant 0 : index
    %c0_24 = arith.constant 0 : index
    %c1_25 = arith.constant 1 : index
    %c0_26 = arith.constant 0 : index
    %c128_27 = arith.constant 128 : index
    %16 = vector.load %arg1[%c0_23, %c0_24, %c1_25, %c0_26, %c128_27] : memref<1x9x2x9x256xbf16, #tpu.memory_space<vmem>>, vector<1x8x1x8x128xbf16>
    %17 = vector.shape_cast %16 : vector<1x8x1x8x128xbf16> to vector<8x8x128xbf16>
    %18 = vector.shape_cast %17 : vector<8x8x128xbf16> to vector<64x128xbf16>
    %c0_28 = arith.constant 0 : index
    %c512 = arith.constant 512 : index
    %19 = vector.load %arg5[%c0_28, %c512] : memref<64x1152xbf16, #tpu.memory_space<vmem>>, vector<64x128xbf16>
    tpu.vector_store %arg5[%c0_28, %c512], %18 {strides = array<i32>} : memref<64x1152xbf16, #tpu.memory_space<vmem>>, vector<64x128xbf16>,
    %c0_29 = arith.constant 0 : index
    %c0_30 = arith.constant 0 : index
    %c1_31 = arith.constant 1 : index
    %c1_32 = arith.constant 1 : index
    %c0_33 = arith.constant 0 : index
    %20 = vector.load %arg1[%c0_29, %c0_30, %c1_31, %c1_32, %c0_33] : memref<1x9x2x9x256xbf16, #tpu.memory_space<vmem>>, vector<1x8x1x8x128xbf16>
    %21 = vector.shape_cast %20 : vector<1x8x1x8x128xbf16> to vector<8x8x128xbf16>
    %22 = vector.shape_cast %21 : vector<8x8x128xbf16> to vector<64x128xbf16>
    %c0_34 = arith.constant 0 : index
    %c640 = arith.constant 640 : index
    %23 = vector.load %arg5[%c0_34, %c640] : memref<64x1152xbf16, #tpu.memory_space<vmem>>, vector<64x128xbf16>
    tpu.vector_store %arg5[%c0_34, %c640], %22 {strides = array<i32>} : memref<64x1152xbf16, #tpu.memory_space<vmem>>, vector<64x128xbf16>,
    %c0_35 = arith.constant 0 : index
    %c1_36 = arith.constant 1 : index
    %c0_37 = arith.constant 0 : index
    %c0_38 = arith.constant 0 : index
    %c0_39 = arith.constant 0 : index
    %24 = vector.load %arg1[%c0_35, %c1_36, %c0_37, %c0_38, %c0_39] : memref<1x9x2x9x256xbf16, #tpu.memory_space<vmem>>, vector<1x8x1x8x128xbf16>
    %25 = vector.shape_cast %24 : vector<1x8x1x8x128xbf16> to vector<8x8x128xbf16>
    %26 = vector.shape_cast %25 : vector<8x8x128xbf16> to vector<64x128xbf16>
    %c0_40 = arith.constant 0 : index
    %c768 = arith.constant 768 : index
    %27 = vector.load %arg5[%c0_40, %c768] : memref<64x1152xbf16, #tpu.memory_space<vmem>>, vector<64x128xbf16>
    tpu.vector_store %arg5[%c0_40, %c768], %26 {strides = array<i32>} : memref<64x1152xbf16, #tpu.memory_space<vmem>>, vector<64x128xbf16>,
    %c0_41 = arith.constant 0 : index
    %c1_42 = arith.constant 1 : index
    %c0_43 = arith.constant 0 : index
    %c0_44 = arith.constant 0 : index
    %c128_45 = arith.constant 128 : index
    %28 = vector.load %arg1[%c0_41, %c1_42, %c0_43, %c0_44, %c128_45] : memref<1x9x2x9x256xbf16, #tpu.memory_space<vmem>>, vector<1x8x1x8x128xbf16>
    %29 = vector.shape_cast %28 : vector<1x8x1x8x128xbf16> to vector<8x8x128xbf16>
    %30 = vector.shape_cast %29 : vector<8x8x128xbf16> to vector<64x128xbf16>
    %c0_46 = arith.constant 0 : index
    %c896 = arith.constant 896 : index
    %31 = vector.load %arg5[%c0_46, %c896] : memref<64x1152xbf16, #tpu.memory_space<vmem>>, vector<64x128xbf16>
    tpu.vector_store %arg5[%c0_46, %c896], %30 {strides = array<i32>} : memref<64x1152xbf16, #tpu.memory_space<vmem>>, vector<64x128xbf16>,
    %c0_47 = arith.constant 0 : index
    %c1_48 = arith.constant 1 : index
    %c0_49 = arith.constant 0 : index
    %c1_50 = arith.constant 1 : index
    %c0_51 = arith.constant 0 : index
    %32 = vector.load %arg1[%c0_47, %c1_48, %c0_49, %c1_50, %c0_51] : memref<1x9x2x9x256xbf16, #tpu.memory_space<vmem>>, vector<1x8x1x8x128xbf16>
    %33 = vector.shape_cast %32 : vector<1x8x1x8x128xbf16> to vector<8x8x128xbf16>
    %34 = vector.shape_cast %33 : vector<8x8x128xbf16> to vector<64x128xbf16>
    %c0_52 = arith.constant 0 : index
    %c1024 = arith.constant 1024 : index
    %35 = vector.load %arg5[%c0_52, %c1024] : memref<64x1152xbf16, #tpu.memory_space<vmem>>, vector<64x128xbf16>
    tpu.vector_store %arg5[%c0_52, %c1024], %34 {strides = array<i32>} : memref<64x1152xbf16, #tpu.memory_space<vmem>>, vector<64x128xbf16>,
    %c0_53 = arith.constant 0 : index
    %c0_54 = arith.constant 0 : index
    %36 = vector.load %arg5[%c0_53, %c0_54] : memref<64x1152xbf16, #tpu.memory_space<vmem>>, vector<64x1152xbf16>
    %c0_55 = arith.constant 0 : index
    %c0_56 = arith.constant 0 : index
    %37 = vector.load %arg2[%c0_55, %c0_56] : memref<1152x128xbf16, #tpu.memory_space<vmem>>, vector<1152x128xbf16>
    %cst = arith.constant dense<0.000000e+00> : vector<64x128xf32>
    %38 = tpu.matmul %36, %37, %cst {dimension_numbers = #tpu.dot_dimension_numbers<[1], [0], [0], [1], [0, 0, 1, 1], [], []>} : vector<64x1152xbf16>, vector<1152x128xbf16>, vector<64x128xf32> -> vector<64x128xf32>
    %c0_57 = arith.constant 0 : index
    %c0_58 = arith.constant 0 : index
    %39 = vector.load %arg3[%c0_57, %c0_58] : memref<1x128xf32, #tpu.memory_space<vmem>>, vector<1x128xf32>
    %40 = vector.broadcast %39 : vector<1x128xf32> to vector<64x128xf32>
    %41 = arith.addf %38, %40 : vector<64x128xf32>
    %42 = vector.shape_cast %41 : vector<64x128xf32> to vector<8x8x128xf32>
    %43 = arith.truncf %42 : vector<8x8x128xf32> to vector<8x8x128xbf16>
    %c0_59 = arith.constant 0 : index
    %c0_60 = arith.constant 0 : index
    %c0_61 = arith.constant 0 : index
    %c0_62 = arith.constant 0 : index
    %44 = vector.load %arg4[%c0_59, %c0_60, %c0_61, %c0_62] : memref<1x8x8x128xbf16, #tpu.memory_space<vmem>>, vector<1x8x8x128xbf16>
    %45 = vector.shape_cast %44 : vector<1x8x8x128xbf16> to vector<8x8x128xbf16>
    %46 = vector.shape_cast %43 : vector<8x8x128xbf16> to vector<1x8x8x128xbf16>
    tpu.vector_store %arg4[%c0_59, %c0_60, %c0_61, %c0_62], %46 {strides = array<i32>} : memref<1x8x8x128xbf16, #tpu.memory_space<vmem>>, vector<1x8x8x128xbf16>,
    return
  }
  func.func @transform_0(%arg0: i32) -> (i32, i32, i32, i32, i32) {
    %c0_i32 = arith.constant 0 : i32
    %c0_i32_0 = arith.constant 0 : i32
    %c0_i32_1 = arith.constant 0 : i32
    %c0_i32_2 = arith.constant 0 : i32
    %c0_i32_3 = arith.constant 0 : i32
    return %arg0, %c0_i32, %c0_i32_0, %c0_i32_1, %c0_i32_2 : i32, i32, i32, i32, i32
  }
  func.func @transform_1(%arg0: i32) -> (i32, i32) {
    %c0_i32 = arith.constant 0 : i32
    %c0_i32_0 = arith.constant 0 : i32
    %c0_i32_1 = arith.constant 0 : i32
    return %c0_i32, %c0_i32_0 : i32, i32
  }
  func.func @transform_2(%arg0: i32) -> (i32, i32) {
    %c0_i32 = arith.constant 0 : i32
    %c0_i32_0 = arith.constant 0 : i32
    %c0_i32_1 = arith.constant 0 : i32
    return %c0_i32, %c0_i32_0 : i32, i32
  }
  func.func @transform_3(%arg0: i32) -> (i32, i32, i32, i32) {
    %c0_i32 = arith.constant 0 : i32
    %c0_i32_0 = arith.constant 0 : i32
    %c0_i32_1 = arith.constant 0 : i32
    %c0_i32_2 = arith.constant 0 : i32
    return %arg0, %c0_i32, %c0_i32_0, %c0_i32_1 : i32, i32, i32, i32
  }
}

</mosaic_0001>

<llo_original>
// kernel: tpu_custom_call.1
$region0: #{tpu_custom_call.1}
  #allocation0 [shape = 'u32[]', space=smem, size = 0x4, offset = 0x4, fixed_abs, tag = 'smem constant byte address 0x4 - core index']
  #allocation1 [shape = 'u32[144,128]{1,0:T(1,128)}', space=vmem, size = 0x12000, scoped, tag = 'internal scratch']
  #allocation2 [shape = 'bf16[64,1152]{1,0:T(8,128)(2,1)}', space=vmem, size = 0x24000, scoped, tag = 'scratch operand']
  %s0 = inlined_call_operand.vmem [shape: bf16[2,9,2,9,256], index: 0, kind: input, shape index: {}]
  %s1 = inlined_call_operand.vmem [shape: bf16[1152,128], index: 1, kind: input, shape index: {}]
  %s2 = inlined_call_operand.vmem [shape: f32[1,128], index: 2, kind: input, shape index: {}]
  %s3 = inlined_call_operand.hbm [shape: bf16[2,8,8,128], index: 3, kind: output, shape index: {}]
  %s4 = sld [smem:[#allocation0]]
  $region45: #{tpu_custom_call.1} parent=0
    _
  %s6 = ssub.s32 1, %s4
  %s7 = scalar_select 0, %s6, %s4
  $region1: #{tpu_custom_call.1} parent=0
    #allocation3 [shape = 'u8[32768]{0}', space=vmem, size = 0x8000, scoped, tag = 'output window, operand 0']
    #allocation4 [shape = 's32[2]{0}', space=sflag, size = 0x8, scoped, tag = 'scoped memory for tpu_custom_call.1']
    %8 = vsyncpa [#allocation4], 0
    %s9 = scalar_lea.sflag [#allocation4], 1
    %10 = vsyncpa %s9, 0
    loop: start=0, step=1, limit=4
    $region2: #{tpu_custom_call.1} parent=1 // loop_pre_header
      _
    $region3: #{tpu_custom_call.1} parent=1 // loop_header
      %s12 = sphi 0, %s16
      %p13 = scmp.ge.s32.totalorder %s12, 4
      %s22 = sphi 0, %s24
      %s25 = sphi 0, %s22
      %s26 = sphi 0, %s25
      %s42 = sphi 0, %s26
      %s46 = sphi 0, %s46
      %s48 = sphi 0, %s46
      %s49 = sphi 0, %s48
      %s63 = sphi 0, %s49
      %s67 = sphi 0, %s67
      %s69 = sphi 0, %s67
      %s70 = sphi 0, %s69
      %s84 = sphi 0, %s70
      %s90 = sphi 0, %s92
      %s93 = sphi 0, %s90
      %s94 = sphi 0, %s93
      %s110 = sphi 0, %s94
    $region4: #{tpu_custom_call.1} parent=1 // loop_header_branch
      %15 = sbr.rel (%p13) target = $region8
    $region5: #{tpu_custom_call.1} parent=1 // loop_body
      %s17 = ssub.s32 %s12, 1
      %s18 = ssub.s32 %s12, 2
      %s19 = sadd.s32 %s12, 1
      %s20 = ssub.s32 %s12, %s19
      %p21 = scmp.eq.s32.totalorder %s20, 0
      %s23 = sadd.s32 %s22, 1
      %s24 = scalar_select %p21, %s22, %s23
      %p27 = pneg %p21
      %p28 = scmp.eq.s32.totalorder %s12, 1
      %p29 = por %p27, %p28
      %p30 = scmp.ne.s32.totalorder %s22, %s25
      %p31 = scmp.eq.s32.totalorder %s12, 0
      %p32 = por %p30, %p31
      %p33 = scmp.ne.s32.totalorder %s22, %s25
      %p34 = scmp.eq.s32.totalorder %s17, 1
      %p35 = por %p33, %p34
      %p36 = scmp.ne.s32.totalorder %s25, %s26
      %p37 = scmp.eq.s32.totalorder %s17, 0
      %p38 = por %p36, %p37
      %p39 = scmp.ne.s32.totalorder %s25, %s26
      %p40 = scmp.eq.s32.totalorder %s18, 1
      %p41 = por %p39, %p40
      %p43 = scmp.ne.s32.totalorder %s26, %s42
      %p44 = scmp.eq.s32.totalorder %s18, 0
      %p45 = por %p43, %p44
      %s47 = sadd.s32 %s46, 1
      %p50 = scmp.eq.s32.totalorder %s12, 1
      %p51 = scmp.ne.s32.totalorder %s46, %s48
      %p52 = scmp.eq.s32.totalorder %s12, 0
      %p53 = por %p51, %p52
      %p54 = scmp.ne.s32.totalorder %s46, %s48
      %p55 = scmp.eq.s32.totalorder %s17, 1
      %p56 = por %p54, %p55
      %p57 = scmp.ne.s32.totalorder %s48, %s49
      %p58 = scmp.eq.s32.totalorder %s17, 0
      %p59 = por %p57, %p58
      %p60 = scmp.ne.s32.totalorder %s48, %s49
      %p61 = scmp.eq.s32.totalorder %s18, 1
      %p62 = por %p60, %p61
      %p64 = scmp.ne.s32.totalorder %s49, %s63
      %p65 = scmp.eq.s32.totalorder %s18, 0
      %p66 = por %p64, %p65
      %s68 = sadd.s32 %s67, 1
      %p71 = scmp.eq.s32.totalorder %s12, 1
      %p72 = scmp.ne.s32.totalorder %s67, %s69
      %p73 = scmp.eq.s32.totalorder %s12, 0
      %p74 = por %p72, %p73
      %p75 = scmp.ne.s32.totalorder %s67, %s69
      %p76 = scmp.eq.s32.totalorder %s17, 1
      %p77 = por %p75, %p76
      %p78 = scmp.ne.s32.totalorder %s69, %s70
      %p79 = scmp.eq.s32.totalorder %s17, 0
      %p80 = por %p78, %p79
      %p81 = scmp.ne.s32.totalorder %s69, %s70
      %p82 = scmp.eq.s32.totalorder %s18, 1
      %p83 = por %p81, %p82
      %p85 = scmp.ne.s32.totalorder %s70, %s84
      %p86 = scmp.eq.s32.totalorder %s18, 0
      %p87 = por %p85, %p86
      %s88 = ssub.s32 %s12, %s19
      %p89 = scmp.eq.s32.totalorder %s88, 0
      %s91 = sadd.s32 %s90, 1
      %s92 = scalar_select %p89, %s90, %s91
      %p95 = pneg %p89
      %p96 = scmp.eq.s32.totalorder %s12, 1
      %p97 = por %p95, %p96
      %p98 = scmp.ne.s32.totalorder %s90, %s93
      %p99 = scmp.eq.s32.totalorder %s12, 0
      %p100 = por %p98, %p99
      %p101 = scmp.ne.s32.totalorder %s90, %s93
      %p102 = scmp.eq.s32.totalorder %s17, 1
      %p103 = por %p101, %p102
      %p104 = scmp.ne.s32.totalorder %s93, %s94
      %p105 = scmp.eq.s32.totalorder %s17, 0
      %p106 = por %p104, %p105
      %p107 = scmp.ne.s32.totalorder %s93, %s94
      %p108 = scmp.eq.s32.totalorder %s18, 1
      %p109 = por %p107, %p108
      %p111 = scmp.ne.s32.totalorder %s94, %s110
      %p112 = scmp.eq.s32.totalorder %s18, 0
      %p113 = por %p111, %p112
      %p114 = scmp.le.s32.totalorder 1, %s12
      %p115 = scmp.lt.s32.totalorder %s12, 3
      %p116 = pnand %p114, %p115
      %p117 = pneg %p116
      // Predicated region
      $region9: #{tpu_custom_call.1} parent=5 // pred_check
        _
      $region10: #{tpu_custom_call.1} parent=5 // pred_check_branch
        %119 = sbr.rel (%p116) target = $region12
      $region11: #{tpu_custom_call.1} parent=5 // pred_region
        %s120 = ssub.s32 %s12, 1
        // Predicated region
        $region13: #{tpu_custom_call.1} parent=11 // pred_check
          %p121 = pneg %p59
        $region14: #{tpu_custom_call.1} parent=11 // pred_check_branch
          %123 = sbr.rel (%p121) target = $region16
        $region15: #{tpu_custom_call.1} parent=11 // pred_region
          _
        $region16: #{tpu_custom_call.1} parent=11 // pred_fallthru
          _
        // Predicated region
        $region17: #{tpu_custom_call.1} parent=11 // pred_check
          %p124 = pneg %p80
        $region18: #{tpu_custom_call.1} parent=11 // pred_check_branch
          %126 = sbr.rel (%p124) target = $region20
        $region19: #{tpu_custom_call.1} parent=11 // pred_region
          _
        $region20: #{tpu_custom_call.1} parent=11 // pred_fallthru
          _
      $region12: #{tpu_custom_call.1} parent=5 // pred_fallthru
        _
      %p127 = scmp.lt.s32.totalorder %s12, 2
      // Predicated region
      $region21: #{tpu_custom_call.1} parent=5 // pred_check
        %p128 = pneg %p127
      $region22: #{tpu_custom_call.1} parent=5 // pred_check_branch
        %130 = sbr.rel (%p128) target = $region24
      $region23: #{tpu_custom_call.1} parent=5 // pred_region
        // Predicated region
        $region25: #{tpu_custom_call.1} parent=23 // pred_check
          %p131 = pneg %p32
        $region26: #{tpu_custom_call.1} parent=23 // pred_check_branch
          %133 = sbr.rel (%p131) target = $region28
        $region27: #{tpu_custom_call.1} parent=23 // pred_region
          %p134 = scmp.lt.s32.totalorder %s12, 1
          %s135 = scalar_select %p134, %s12, 1
          %s136 = smul.addr %s135, 72
          %s137 = smul.addr %s136, 4
          %s138 = scalar_lea.vmem %s0, %s137
        $region28: #{tpu_custom_call.1} parent=23 // pred_fallthru
          _
      $region24: #{tpu_custom_call.1} parent=5 // pred_fallthru
        _
      %p139 = scmp.le.s32.totalorder 1, %s12
      %p140 = scmp.lt.s32.totalorder %s12, 3
      %p141 = pnand %p139, %p140
      %p142 = pneg %p141
      // Predicated region
      $region29: #{tpu_custom_call.1} parent=5 // pred_check
        _
      $region30: #{tpu_custom_call.1} parent=5 // pred_check_branch
        %144 = sbr.rel (%p141) target = $region32
      $region31: #{tpu_custom_call.1} parent=5 // pred_region
        %s145 = ssub.s32 %s12, 1
        %p146 = scmp.lt.s32.totalorder %s17, 1
        %s147 = scalar_select %p146, %s17, 1
        %s148 = smul.addr %s147, 72
        %s149 = smul.addr %s148, 4
        %s150 = scalar_lea.vmem %s0, %s149
        %p151 = pneg %p38
        %p152 = pneg %p35
        %p153 = pneg %p59
        %p154 = pneg %p56
        %p155 = pneg %p80
        %p156 = pneg %p77
        %p157 = pneg %p106
        %p158 = pneg %p103
        %s159 = sand.u32 %s93, 1
        %s160 = scalar_lea.sflag [#allocation4], %s159
        %s161 = sand.u32 %s93, 1
        %s162 = smul.addr %s161, 32
        %s163 = scalar_lea.vmem [#allocation3], %s162
        %p164 = scmp.lt.s32.totalorder %s17, 1
        %s165 = scalar_select %p164, %s17, 1
        %s166 = smul.addr %s165, 72
        %s167 = smul.addr %s166, 4
        %s168 = scalar_lea.vmem %s0, %s167
        %v170 = vld [vmem:[%s168] sm:$0xf]
        %v171 = vld [vmem:[%s168 + $0x20] sm:$0xf]
        %v172 = vld [vmem:[%s168 + $0x40] sm:$0xf]
        %v173 = vld [vmem:[%s168 + $0x60] sm:$0xf]
        %v174 = vld [vmem:[%s168 + $0x80] sm:$0xf]
        %v175 = vld [vmem:[%s168 + $0xa0] sm:$0xf]
        %v176 = vld [vmem:[%s168 + $0xc0] sm:$0xf]
        %v177 = vld [vmem:[%s168 + $0xe0] sm:$0xf]
        %178 = vst [vmem:[#allocation2] sm:$0xf] %v170
        %179 = vst [vmem:[#allocation2 + $0x24] sm:$0xf] %v171
        %180 = vst [vmem:[#allocation2 + $0x48] sm:$0xf] %v172
        %181 = vst [vmem:[#allocation2 + $0x6c] sm:$0xf] %v173
        %182 = vst [vmem:[#allocation2 + $0x90] sm:$0xf] %v174
        %183 = vst [vmem:[#allocation2 + $0xb4] sm:$0xf] %v175
        %184 = vst [vmem:[#allocation2 + $0xd8] sm:$0xf] %v176
        %185 = vst [vmem:[#allocation2 + $0xfc] sm:$0xf] %v177
        %v186 = vld [vmem:[%s168 + $0x4] sm:$0xf]
        %v187 = vld [vmem:[%s168 + $0x24] sm:$0xf]
        %v188 = vld [vmem:[%s168 + $0x44] sm:$0xf]
        %v189 = vld [vmem:[%s168 + $0x64] sm:$0xf]
        %v190 = vld [vmem:[%s168 + $0x84] sm:$0xf]
        %v191 = vld [vmem:[%s168 + $0xa4] sm:$0xf]
        %v192 = vld [vmem:[%s168 + $0xc4] sm:$0xf]
        %v193 = vld [vmem:[%s168 + $0xe4] sm:$0xf]
        %194 = vst [vmem:[#allocation2 + $0x4] sm:$0xf] %v186
        %195 = vst [vmem:[#allocation2 + $0x28] sm:$0xf] %v187
        %196 = vst [vmem:[#allocation2 + $0x4c] sm:$0xf] %v188
        %197 = vst [vmem:[#allocation2 + $0x70] sm:$0xf] %v189
        %198 = vst [vmem:[#allocation2 + $0x94] sm:$0xf] %v190
        %199 = vst [vmem:[#allocation2 + $0xb8] sm:$0xf] %v191
        %200 = vst [vmem:[#allocation2 + $0xdc] sm:$0xf] %v192
        %201 = vst [vmem:[#allocation2 + $0x100] sm:$0xf] %v193
        %v202 = vld [vmem:[%s168] sm:$0xf]
        %v203 = vld [vmem:[%s168 + $0x8] sm:$0x1]
        %v204 = vld [vmem:[%s168 + $0x20] sm:$0xf]
        %v205 = vld [vmem:[%s168 + $0x28] sm:$0x1]
        %v206 = vld [vmem:[%s168 + $0x40] sm:$0xf]
        %v207 = vld [vmem:[%s168 + $0x48] sm:$0x1]
        %v208 = vld [vmem:[%s168 + $0x60] sm:$0xf]
        %v209 = vld [vmem:[%s168 + $0x68] sm:$0x1]
        %v210 = vld [vmem:[%s168 + $0x80] sm:$0xf]
        %v211 = vld [vmem:[%s168 + $0x88] sm:$0x1]
        %v212 = vld [vmem:[%s168 + $0xa0] sm:$0xf]
        %v213 = vld [vmem:[%s168 + $0xa8] sm:$0x1]
        %v214 = vld [vmem:[%s168 + $0xc0] sm:$0xf]
        %v215 = vld [vmem:[%s168 + $0xc8] sm:$0x1]
        %v216 = vld [vmem:[%s168 + $0xe0] sm:$0xf]
        %v217 = vld [vmem:[%s168 + $0xe8] sm:$0x1]
        %vm218 = vsmask.f32 3328
        %vm219 = vsmask.f32 7440
        %vm220 = vmor %vm218, %vm219
        %v222 = vshrl.u32 %v202, 16
        %v224 = vrot.slane %v222, 4
        %v225 = vshll.u32 %v202, 16
        %v227 = vrot.slane %v225, 5
        %v228 = vor.u32 %v224, %v227
        %v229 = vrot.slane %v228, 4
        %v231 = vshll.u32 %v203, 16
        %v233 = vrot.slane %v231, 5
        %v234 = vsel %vm220, %v229, %v233
        %v236 = vshrl.u32 %v204, 16
        %v238 = vrot.slane %v236, 4
        %v239 = vshll.u32 %v204, 16
        %v241 = vrot.slane %v239, 5
        %v242 = vor.u32 %v238, %v241
        %v243 = vrot.slane %v242, 4
        %v245 = vshll.u32 %v205, 16
        %v247 = vrot.slane %v245, 5
        %v248 = vsel %vm220, %v243, %v247
        %v250 = vshrl.u32 %v206, 16
        %v252 = vrot.slane %v250, 4
        %v253 = vshll.u32 %v206, 16
        %v255 = vrot.slane %v253, 5
        %v256 = vor.u32 %v252, %v255
        %v257 = vrot.slane %v256, 4
        %v259 = vshll.u32 %v207, 16
        %v261 = vrot.slane %v259, 5
        %v262 = vsel %vm220, %v257, %v261
        %v264 = vshrl.u32 %v208, 16
        %v266 = vrot.slane %v264, 4
        %v267 = vshll.u32 %v208, 16
        %v269 = vrot.slane %v267, 5
        %v270 = vor.u32 %v266, %v269
        %v271 = vrot.slane %v270, 4
        %v273 = vshll.u32 %v209, 16
        %v275 = vrot.slane %v273, 5
        %v276 = vsel %vm220, %v271, %v275
        %v278 = vshrl.u32 %v210, 16
        %v280 = vrot.slane %v278, 4
        %v281 = vshll.u32 %v210, 16
        %v283 = vrot.slane %v281, 5
        %v284 = vor.u32 %v280, %v283
        %v285 = vrot.slane %v284, 4
        %v287 = vshll.u32 %v211, 16
        %v289 = vrot.slane %v287, 5
        %v290 = vsel %vm220, %v285, %v289
        %v292 = vshrl.u32 %v212, 16
        %v294 = vrot.slane %v292, 4
        %v295 = vshll.u32 %v212, 16
        %v297 = vrot.slane %v295, 5
        %v298 = vor.u32 %v294, %v297
        %v299 = vrot.slane %v298, 4
        %v301 = vshll.u32 %v213, 16
        %v303 = vrot.slane %v301, 5
        %v304 = vsel %vm220, %v299, %v303
        %v306 = vshrl.u32 %v214, 16
        %v308 = vrot.slane %v306, 4
        %v309 = vshll.u32 %v214, 16
        %v311 = vrot.slane %v309, 5
        %v312 = vor.u32 %v308, %v311
        %v313 = vrot.slane %v312, 4
        %v315 = vshll.u32 %v215, 16
        %v317 = vrot.slane %v315, 5
        %v318 = vsel %vm220, %v313, %v317
        %v320 = vshrl.u32 %v216, 16
        %v322 = vrot.slane %v320, 4
        %v323 = vshll.u32 %v216, 16
        %v325 = vrot.slane %v323, 5
        %v326 = vor.u32 %v322, %v325
        %v327 = vrot.slane %v326, 4
        %v329 = vshll.u32 %v217, 16
        %v331 = vrot.slane %v329, 5
        %v332 = vsel %vm220, %v327, %v331
        %341 = vst [vmem:[#allocation2 + $0x8] sm:$0xf] %v234
        %342 = vst [vmem:[#allocation2 + $0x2c] sm:$0xf] %v248
        %343 = vst [vmem:[#allocation2 + $0x50] sm:$0xf] %v262
        %344 = vst [vmem:[#allocation2 + $0x74] sm:$0xf] %v276
        %345 = vst [vmem:[#allocation2 + $0x98] sm:$0xf] %v290
        %346 = vst [vmem:[#allocation2 + $0xbc] sm:$0xf] %v304
        %347 = vst [vmem:[#allocation2 + $0xe0] sm:$0xf] %v318
        %348 = vst [vmem:[#allocation2 + $0x104] sm:$0xf] %v332
        %s349 = scalar_lea.vmem %s168, 16
        %v350 = vld [vmem:[%s349] sm:$0xf]
        %v351 = vld [vmem:[%s349 + $0x20] sm:$0xf]
        %v352 = vld [vmem:[%s349 + $0x40] sm:$0xf]
        %v353 = vld [vmem:[%s349 + $0x60] sm:$0xf]
        %v354 = vld [vmem:[%s349 + $0x80] sm:$0xf]
        %v355 = vld [vmem:[%s349 + $0xa0] sm:$0xf]
        %v356 = vld [vmem:[%s349 + $0xc0] sm:$0xf]
        %v357 = vld [vmem:[%s349 + $0xe0] sm:$0xf]
        %358 = vst [vmem:[#allocation2 + $0xc] sm:$0xf] %v350
        %359 = vst [vmem:[#allocation2 + $0x30] sm:$0xf] %v351
        %360 = vst [vmem:[#allocation2 + $0x54] sm:$0xf] %v352
        %361 = vst [vmem:[#allocation2 + $0x78] sm:$0xf] %v353
        %362 = vst [vmem:[#allocation2 + $0x9c] sm:$0xf] %v354
        %363 = vst [vmem:[#allocation2 + $0xc0] sm:$0xf] %v355
        %364 = vst [vmem:[#allocation2 + $0xe4] sm:$0xf] %v356
        %365 = vst [vmem:[#allocation2 + $0x108] sm:$0xf] %v357
        %v366 = vld [vmem:[%s349 + $0x4] sm:$0xf]
        %v367 = vld [vmem:[%s349 + $0x24] sm:$0xf]
        %v368 = vld [vmem:[%s349 + $0x44] sm:$0xf]
        %v369 = vld [vmem:[%s349 + $0x64] sm:$0xf]
        %v370 = vld [vmem:[%s349 + $0x84] sm:$0xf]
        %v371 = vld [vmem:[%s349 + $0xa4] sm:$0xf]
        %v372 = vld [vmem:[%s349 + $0xc4] sm:$0xf]
        %v373 = vld [vmem:[%s349 + $0xe4] sm:$0xf]
        %374 = vst [vmem:[#allocation2 + $0x10] sm:$0xf] %v366
        %375 = vst [vmem:[#allocation2 + $0x34] sm:$0xf] %v367
        %376 = vst [vmem:[#allocation2 + $0x58] sm:$0xf] %v368
        %377 = vst [vmem:[#allocation2 + $0x7c] sm:$0xf] %v369
        %378 = vst [vmem:[#allocation2 + $0xa0] sm:$0xf] %v370
        %379 = vst [vmem:[#allocation2 + $0xc4] sm:$0xf] %v371
        %380 = vst [vmem:[#allocation2 + $0xe8] sm:$0xf] %v372
        %381 = vst [vmem:[#allocation2 + $0x10c] sm:$0xf] %v373
        %v382 = vld [vmem:[%s349] sm:$0xf]
        %v383 = vld [vmem:[%s349 + $0x8] sm:$0x1]
        %v384 = vld [vmem:[%s349 + $0x20] sm:$0xf]
        %v385 = vld [vmem:[%s349 + $0x28] sm:$0x1]
        %v386 = vld [vmem:[%s349 + $0x40] sm:$0xf]
        %v387 = vld [vmem:[%s349 + $0x48] sm:$0x1]
        %v388 = vld [vmem:[%s349 + $0x60] sm:$0xf]
        %v389 = vld [vmem:[%s349 + $0x68] sm:$0x1]
        %v390 = vld [vmem:[%s349 + $0x80] sm:$0xf]
        %v391 = vld [vmem:[%s349 + $0x88] sm:$0x1]
        %v392 = vld [vmem:[%s349 + $0xa0] sm:$0xf]
        %v393 = vld [vmem:[%s349 + $0xa8] sm:$0x1]
        %v394 = vld [vmem:[%s349 + $0xc0] sm:$0xf]
        %v395 = vld [vmem:[%s349 + $0xc8] sm:$0x1]
        %v396 = vld [vmem:[%s349 + $0xe0] sm:$0xf]
        %v397 = vld [vmem:[%s349 + $0xe8] sm:$0x1]
        %v399 = vshrl.u32 %v382, 16
        %v401 = vrot.slane %v399, 4
        %v402 = vshll.u32 %v382, 16
        %v404 = vrot.slane %v402, 5
        %v405 = vor.u32 %v401, %v404
        %v406 = vrot.slane %v405, 4
        %v408 = vshll.u32 %v383, 16
        %v410 = vrot.slane %v408, 5
        %v411 = vsel %vm220, %v406, %v410
        %v413 = vshrl.u32 %v384, 16
        %v415 = vrot.slane %v413, 4
        %v416 = vshll.u32 %v384, 16
        %v418 = vrot.slane %v416, 5
        %v419 = vor.u32 %v415, %v418
        %v420 = vrot.slane %v419, 4
        %v422 = vshll.u32 %v385, 16
        %v424 = vrot.slane %v422, 5
        %v425 = vsel %vm220, %v420, %v424
        %v427 = vshrl.u32 %v386, 16
        %v429 = vrot.slane %v427, 4
        %v430 = vshll.u32 %v386, 16
        %v432 = vrot.slane %v430, 5
        %v433 = vor.u32 %v429, %v432
        %v434 = vrot.slane %v433, 4
        %v436 = vshll.u32 %v387, 16
        %v438 = vrot.slane %v436, 5
        %v439 = vsel %vm220, %v434, %v438
        %v441 = vshrl.u32 %v388, 16
        %v443 = vrot.slane %v441, 4
        %v444 = vshll.u32 %v388, 16
        %v446 = vrot.slane %v444, 5
        %v447 = vor.u32 %v443, %v446
        %v448 = vrot.slane %v447, 4
        %v450 = vshll.u32 %v389, 16
        %v452 = vrot.slane %v450, 5
        %v453 = vsel %vm220, %v448, %v452
        %v455 = vshrl.u32 %v390, 16
        %v457 = vrot.slane %v455, 4
        %v458 = vshll.u32 %v390, 16
        %v460 = vrot.slane %v458, 5
        %v461 = vor.u32 %v457, %v460
        %v462 = vrot.slane %v461, 4
        %v464 = vshll.u32 %v391, 16
        %v466 = vrot.slane %v464, 5
        %v467 = vsel %vm220, %v462, %v466
        %v469 = vshrl.u32 %v392, 16
        %v471 = vrot.slane %v469, 4
        %v472 = vshll.u32 %v392, 16
        %v474 = vrot.slane %v472, 5
        %v475 = vor.u32 %v471, %v474
        %v476 = vrot.slane %v475, 4
        %v478 = vshll.u32 %v393, 16
        %v480 = vrot.slane %v478, 5
        %v481 = vsel %vm220, %v476, %v480
        %v483 = vshrl.u32 %v394, 16
        %v485 = vrot.slane %v483, 4
        %v486 = vshll.u32 %v394, 16
        %v488 = vrot.slane %v486, 5
        %v489 = vor.u32 %v485, %v488
        %v490 = vrot.slane %v489, 4
        %v492 = vshll.u32 %v395, 16
        %v494 = vrot.slane %v492, 5
        %v495 = vsel %vm220, %v490, %v494
        %v497 = vshrl.u32 %v396, 16
        %v499 = vrot.slane %v497, 4
        %v500 = vshll.u32 %v396, 16
        %v502 = vrot.slane %v500, 5
        %v503 = vor.u32 %v499, %v502
        %v504 = vrot.slane %v503, 4
        %v506 = vshll.u32 %v397, 16
        %v508 = vrot.slane %v506, 5
        %v509 = vsel %vm220, %v504, %v508
        %518 = vst [vmem:[#allocation2 + $0x14] sm:$0xf] %v411
        %519 = vst [vmem:[#allocation2 + $0x38] sm:$0xf] %v425
        %520 = vst [vmem:[#allocation2 + $0x5c] sm:$0xf] %v439
        %521 = vst [vmem:[#allocation2 + $0x80] sm:$0xf] %v453
        %522 = vst [vmem:[#allocation2 + $0xa4] sm:$0xf] %v467
        %523 = vst [vmem:[#allocation2 + $0xc8] sm:$0xf] %v481
        %524 = vst [vmem:[#allocation2 + $0xec] sm:$0xf] %v495
        %525 = vst [vmem:[#allocation2 + $0x110] sm:$0xf] %v509
        %s526 = scalar_lea.vmem %s168, 32
        %v527 = vld [vmem:[%s526] sm:$0xf]
        %v528 = vld [vmem:[%s526 + $0x20] sm:$0xf]
        %v529 = vld [vmem:[%s526 + $0x40] sm:$0xf]
        %v530 = vld [vmem:[%s526 + $0x60] sm:$0xf]
        %v531 = vld [vmem:[%s526 + $0x80] sm:$0xf]
        %v532 = vld [vmem:[%s526 + $0xa0] sm:$0xf]
        %v533 = vld [vmem:[%s526 + $0xc0] sm:$0xf]
        %v534 = vld [vmem:[%s526 + $0xe0] sm:$0xf]
        %535 = vst [vmem:[#allocation2 + $0x18] sm:$0xf] %v527
        %536 = vst [vmem:[#allocation2 + $0x3c] sm:$0xf] %v528
        %537 = vst [vmem:[#allocation2 + $0x60] sm:$0xf] %v529
        %538 = vst [vmem:[#allocation2 + $0x84] sm:$0xf] %v530
        %539 = vst [vmem:[#allocation2 + $0xa8] sm:$0xf] %v531
        %540 = vst [vmem:[#allocation2 + $0xcc] sm:$0xf] %v532
        %541 = vst [vmem:[#allocation2 + $0xf0] sm:$0xf] %v533
        %542 = vst [vmem:[#allocation2 + $0x114] sm:$0xf] %v534
        %v543 = vld [vmem:[%s526 + $0x4] sm:$0xf]
        %v544 = vld [vmem:[%s526 + $0x24] sm:$0xf]
        %v545 = vld [vmem:[%s526 + $0x44] sm:$0xf]
        %v546 = vld [vmem:[%s526 + $0x64] sm:$0xf]
        %v547 = vld [vmem:[%s526 + $0x84] sm:$0xf]
        %v548 = vld [vmem:[%s526 + $0xa4] sm:$0xf]
        %v549 = vld [vmem:[%s526 + $0xc4] sm:$0xf]
        %v550 = vld [vmem:[%s526 + $0xe4] sm:$0xf]
        %551 = vst [vmem:[#allocation2 + $0x1c] sm:$0xf] %v543
        %552 = vst [vmem:[#allocation2 + $0x40] sm:$0xf] %v544
        %553 = vst [vmem:[#allocation2 + $0x64] sm:$0xf] %v545
        %554 = vst [vmem:[#allocation2 + $0x88] sm:$0xf] %v546
        %555 = vst [vmem:[#allocation2 + $0xac] sm:$0xf] %v547
        %556 = vst [vmem:[#allocation2 + $0xd0] sm:$0xf] %v548
        %557 = vst [vmem:[#allocation2 + $0xf4] sm:$0xf] %v549
        %558 = vst [vmem:[#allocation2 + $0x118] sm:$0xf] %v550
        %v559 = vld [vmem:[%s526] sm:$0xf]
        %v560 = vld [vmem:[%s526 + $0x8] sm:$0x1]
        %v561 = vld [vmem:[%s526 + $0x20] sm:$0xf]
        %v562 = vld [vmem:[%s526 + $0x28] sm:$0x1]
        %v563 = vld [vmem:[%s526 + $0x40] sm:$0xf]
        %v564 = vld [vmem:[%s526 + $0x48] sm:$0x1]
        %v565 = vld [vmem:[%s526 + $0x60] sm:$0xf]
        %v566 = vld [vmem:[%s526 + $0x68] sm:$0x1]
        %v567 = vld [vmem:[%s526 + $0x80] sm:$0xf]
        %v568 = vld [vmem:[%s526 + $0x88] sm:$0x1]
        %v569 = vld [vmem:[%s526 + $0xa0] sm:$0xf]
        %v570 = vld [vmem:[%s526 + $0xa8] sm:$0x1]
        %v571 = vld [vmem:[%s526 + $0xc0] sm:$0xf]
        %v572 = vld [vmem:[%s526 + $0xc8] sm:$0x1]
        %v573 = vld [vmem:[%s526 + $0xe0] sm:$0xf]
        %v574 = vld [vmem:[%s526 + $0xe8] sm:$0x1]
        %v576 = vshrl.u32 %v559, 16
        %v578 = vrot.slane %v576, 4
        %v579 = vshll.u32 %v559, 16
        %v581 = vrot.slane %v579, 5
        %v582 = vor.u32 %v578, %v581
        %v583 = vrot.slane %v582, 4
        %v585 = vshll.u32 %v560, 16
        %v587 = vrot.slane %v585, 5
        %v588 = vsel %vm220, %v583, %v587
        %v590 = vshrl.u32 %v561, 16
        %v592 = vrot.slane %v590, 4
        %v593 = vshll.u32 %v561, 16
        %v595 = vrot.slane %v593, 5
        %v596 = vor.u32 %v592, %v595
        %v597 = vrot.slane %v596, 4
        %v599 = vshll.u32 %v562, 16
        %v601 = vrot.slane %v599, 5
        %v602 = vsel %vm220, %v597, %v601
        %v604 = vshrl.u32 %v563, 16
        %v606 = vrot.slane %v604, 4
        %v607 = vshll.u32 %v563, 16
        %v609 = vrot.slane %v607, 5
        %v610 = vor.u32 %v606, %v609
        %v611 = vrot.slane %v610, 4
        %v613 = vshll.u32 %v564, 16
        %v615 = vrot.slane %v613, 5
        %v616 = vsel %vm220, %v611, %v615
        %v618 = vshrl.u32 %v565, 16
        %v620 = vrot.slane %v618, 4
        %v621 = vshll.u32 %v565, 16
        %v623 = vrot.slane %v621, 5
        %v624 = vor.u32 %v620, %v623
        %v625 = vrot.slane %v624, 4
        %v627 = vshll.u32 %v566, 16
        %v629 = vrot.slane %v627, 5
        %v630 = vsel %vm220, %v625, %v629
        %v632 = vshrl.u32 %v567, 16
        %v634 = vrot.slane %v632, 4
        %v635 = vshll.u32 %v567, 16
        %v637 = vrot.slane %v635, 5
        %v638 = vor.u32 %v634, %v637
        %v639 = vrot.slane %v638, 4
        %v641 = vshll.u32 %v568, 16
        %v643 = vrot.slane %v641, 5
        %v644 = vsel %vm220, %v639, %v643
        %v646 = vshrl.u32 %v569, 16
        %v648 = vrot.slane %v646, 4
        %v649 = vshll.u32 %v569, 16
        %v651 = vrot.slane %v649, 5
        %v652 = vor.u32 %v648, %v651
        %v653 = vrot.slane %v652, 4
        %v655 = vshll.u32 %v570, 16
        %v657 = vrot.slane %v655, 5
        %v658 = vsel %vm220, %v653, %v657
        %v660 = vshrl.u32 %v571, 16
        %v662 = vrot.slane %v660, 4
        %v663 = vshll.u32 %v571, 16
        %v665 = vrot.slane %v663, 5
        %v666 = vor.u32 %v662, %v665
        %v667 = vrot.slane %v666, 4
        %v669 = vshll.u32 %v572, 16
        %v671 = vrot.slane %v669, 5
        %v672 = vsel %vm220, %v667, %v671
        %v674 = vshrl.u32 %v573, 16
        %v676 = vrot.slane %v674, 4
        %v677 = vshll.u32 %v573, 16
        %v679 = vrot.slane %v677, 5
        %v680 = vor.u32 %v676, %v679
        %v681 = vrot.slane %v680, 4
        %v683 = vshll.u32 %v574, 16
        %v685 = vrot.slane %v683, 5
        %v686 = vsel %vm220, %v681, %v685
        %695 = vst [vmem:[#allocation2 + $0x20] sm:$0xf] %v588
        %696 = vst [vmem:[#allocation2 + $0x44] sm:$0xf] %v602
        %697 = vst [vmem:[#allocation2 + $0x68] sm:$0xf] %v616
        %698 = vst [vmem:[#allocation2 + $0x8c] sm:$0xf] %v630
        %699 = vst [vmem:[#allocation2 + $0xb0] sm:$0xf] %v644
        %700 = vst [vmem:[#allocation2 + $0xd4] sm:$0xf] %v658
        %701 = vst [vmem:[#allocation2 + $0xf8] sm:$0xf] %v672
        %702 = vst [vmem:[#allocation2 + $0x11c] sm:$0xf] %v686
        %v703 = vld [vmem:[#allocation2] sm:$0xff]
        %v704 = vld [vmem:[#allocation2 + $0x8] sm:$0xff]
        %v705 = vld [vmem:[#allocation2 + $0x10] sm:$0xff]
        %v706 = vld [vmem:[#allocation2 + $0x18] sm:$0xff]
        %v707 = vld [vmem:[#allocation2 + $0x20] sm:$0xf]
        %v708 = vld [vmem:[#allocation2 + $0x24] sm:$0xff]
        %v709 = vld [vmem:[#allocation2 + $0x2c] sm:$0xff]
        %v710 = vld [vmem:[#allocation2 + $0x34] sm:$0xff]
        %v711 = vld [vmem:[#allocation2 + $0x3c] sm:$0xff]
        %v712 = vld [vmem:[#allocation2 + $0x44] sm:$0xf]
        %v713 = vld [vmem:[#allocation2 + $0x48] sm:$0xff]
        %v714 = vld [vmem:[#allocation2 + $0x50] sm:$0xff]
        %v715 = vld [vmem:[#allocation2 + $0x58] sm:$0xff]
        %v716 = vld [vmem:[#allocation2 + $0x60] sm:$0xff]
        %v717 = vld [vmem:[#allocation2 + $0x68] sm:$0xf]
        %v718 = vld [vmem:[#allocation2 + $0x6c] sm:$0xff]
        %v719 = vld [vmem:[#allocation2 + $0x74] sm:$0xff]
        %v720 = vld [vmem:[#allocation2 + $0x7c] sm:$0xff]
        %v721 = vld [vmem:[#allocation2 + $0x84] sm:$0xff]
        %v722 = vld [vmem:[#allocation2 + $0x8c] sm:$0xf]
        %v723 = vld [vmem:[#allocation2 + $0x90] sm:$0xff]
        %v724 = vld [vmem:[#allocation2 + $0x98] sm:$0xff]
        %v725 = vld [vmem:[#allocation2 + $0xa0] sm:$0xff]
        %v726 = vld [vmem:[#allocation2 + $0xa8] sm:$0xff]
        %v727 = vld [vmem:[#allocation2 + $0xb0] sm:$0xf]
        %v728 = vld [vmem:[#allocation2 + $0xb4] sm:$0xff]
        %v729 = vld [vmem:[#allocation2 + $0xbc] sm:$0xff]
        %v730 = vld [vmem:[#allocation2 + $0xc4] sm:$0xff]
        %v731 = vld [vmem:[#allocation2 + $0xcc] sm:$0xff]
        %v732 = vld [vmem:[#allocation2 + $0xd4] sm:$0xf]
        %v733 = vld [vmem:[#allocation2 + $0xd8] sm:$0xff]
        %v734 = vld [vmem:[#allocation2 + $0xe0] sm:$0xff]
        %v735 = vld [vmem:[#allocation2 + $0xe8] sm:$0xff]
        %v736 = vld [vmem:[#allocation2 + $0xf0] sm:$0xff]
        %v737 = vld [vmem:[#allocation2 + $0xf8] sm:$0xf]
        %v738 = vld [vmem:[#allocation2 + $0xfc] sm:$0xff]
        %v739 = vld [vmem:[#allocation2 + $0x104] sm:$0xff]
        %v740 = vld [vmem:[#allocation2 + $0x10c] sm:$0xff]
        %v741 = vld [vmem:[#allocation2 + $0x114] sm:$0xff]
        %v742 = vld [vmem:[#allocation2 + $0x11c] sm:$0xf]
        %v743 = vld [vmem:[%s1] sm:$0xf]
        %v744 = vld [vmem:[%s1 + $0x4] sm:$0xf]
        %v745 = vld [vmem:[%s1 + $0x8] sm:$0xf]
        %v746 = vld [vmem:[%s1 + $0xc] sm:$0xf]
        %v747 = vld [vmem:[%s1 + $0x10] sm:$0xf]
        %v748 = vld [vmem:[%s1 + $0x14] sm:$0xf]
        %v749 = vld [vmem:[%s1 + $0x18] sm:$0xf]
        %v750 = vld [vmem:[%s1 + $0x1c] sm:$0xf]
        %v751 = vld [vmem:[%s1 + $0x20] sm:$0xf]
        %v752 = vld [vmem:[%s1 + $0x24] sm:$0xf]
        %v753 = vld [vmem:[%s1 + $0x28] sm:$0xf]
        %v754 = vld [vmem:[%s1 + $0x2c] sm:$0xf]
        %v755 = vld [vmem:[%s1 + $0x30] sm:$0xf]
        %v756 = vld [vmem:[%s1 + $0x34] sm:$0xf]
        %v757 = vld [vmem:[%s1 + $0x38] sm:$0xf]
        %v758 = vld [vmem:[%s1 + $0x3c] sm:$0xf]
        %v759 = vld [vmem:[%s1 + $0x40] sm:$0xf]
        %v760 = vld [vmem:[%s1 + $0x44] sm:$0xf]
        %v761 = vld [vmem:[%s1 + $0x48] sm:$0xf]
        %v762 = vld [vmem:[%s1 + $0x4c] sm:$0xf]
        %v763 = vld [vmem:[%s1 + $0x50] sm:$0xf]
        %v764 = vld [vmem:[%s1 + $0x54] sm:$0xf]
        %v765 = vld [vmem:[%s1 + $0x58] sm:$0xf]
        %v766 = vld [vmem:[%s1 + $0x5c] sm:$0xf]
        %v767 = vld [vmem:[%s1 + $0x60] sm:$0xf]
        %v768 = vld [vmem:[%s1 + $0x64] sm:$0xf]
        %v769 = vld [vmem:[%s1 + $0x68] sm:$0xf]
        %v770 = vld [vmem:[%s1 + $0x6c] sm:$0xf]
        %v771 = vld [vmem:[%s1 + $0x70] sm:$0xf]
        %v772 = vld [vmem:[%s1 + $0x74] sm:$0xf]
        %v773 = vld [vmem:[%s1 + $0x78] sm:$0xf]
        %v774 = vld [vmem:[%s1 + $0x7c] sm:$0xf]
        %v775 = vld [vmem:[%s1 + $0x80] sm:$0xf]
        %v776 = vld [vmem:[%s1 + $0x84] sm:$0xf]
        %v777 = vld [vmem:[%s1 + $0x88] sm:$0xf]
        %v778 = vld [vmem:[%s1 + $0x8c] sm:$0xf]
        %v779 = vld [vmem:[%s1 + $0x90] sm:$0xf]
        %v780 = vld [vmem:[%s1 + $0x94] sm:$0xf]
        %v781 = vld [vmem:[%s1 + $0x98] sm:$0xf]
        %v782 = vld [vmem:[%s1 + $0x9c] sm:$0xf]
        %v783 = vld [vmem:[%s1 + $0xa0] sm:$0xf]
        %v784 = vld [vmem:[%s1 + $0xa4] sm:$0xf]
        %v785 = vld [vmem:[%s1 + $0xa8] sm:$0xf]
        %v786 = vld [vmem:[%s1 + $0xac] sm:$0xf]
        %v787 = vld [vmem:[%s1 + $0xb0] sm:$0xf]
        %v788 = vld [vmem:[%s1 + $0xb4] sm:$0xf]
        %v789 = vld [vmem:[%s1 + $0xb8] sm:$0xf]
        %v790 = vld [vmem:[%s1 + $0xbc] sm:$0xf]
        %v791 = vld [vmem:[%s1 + $0xc0] sm:$0xf]
        %v792 = vld [vmem:[%s1 + $0xc4] sm:$0xf]
        %v793 = vld [vmem:[%s1 + $0xc8] sm:$0xf]
        %v794 = vld [vmem:[%s1 + $0xcc] sm:$0xf]
        %v795 = vld [vmem:[%s1 + $0xd0] sm:$0xf]
        %v796 = vld [vmem:[%s1 + $0xd4] sm:$0xf]
        %v797 = vld [vmem:[%s1 + $0xd8] sm:$0xf]
        %v798 = vld [vmem:[%s1 + $0xdc] sm:$0xf]
        %v799 = vld [vmem:[%s1 + $0xe0] sm:$0xf]
        %v800 = vld [vmem:[%s1 + $0xe4] sm:$0xf]
        %v801 = vld [vmem:[%s1 + $0xe8] sm:$0xf]
        %v802 = vld [vmem:[%s1 + $0xec] sm:$0xf]
        %v803 = vld [vmem:[%s1 + $0xf0] sm:$0xf]
        %v804 = vld [vmem:[%s1 + $0xf4] sm:$0xf]
        %v805 = vld [vmem:[%s1 + $0xf8] sm:$0xf]
        %v806 = vld [vmem:[%s1 + $0xfc] sm:$0xf]
        %v807 = vld [vmem:[%s1 + $0x100] sm:$0xf]
        %v808 = vld [vmem:[%s1 + $0x104] sm:$0xf]
        %v809 = vld [vmem:[%s1 + $0x108] sm:$0xf]
        %v810 = vld [vmem:[%s1 + $0x10c] sm:$0xf]
        %v811 = vld [vmem:[%s1 + $0x110] sm:$0xf]
        %v812 = vld [vmem:[%s1 + $0x114] sm:$0xf]
        %v813 = vld [vmem:[%s1 + $0x118] sm:$0xf]
        %v814 = vld [vmem:[%s1 + $0x11c] sm:$0xf]
        %v815 = vld [vmem:[%s1 + $0x120] sm:$0xf]
        %v816 = vld [vmem:[%s1 + $0x124] sm:$0xf]
        %v817 = vld [vmem:[%s1 + $0x128] sm:$0xf]
        %v818 = vld [vmem:[%s1 + $0x12c] sm:$0xf]
        %v819 = vld [vmem:[%s1 + $0x130] sm:$0xf]
        %v820 = vld [vmem:[%s1 + $0x134] sm:$0xf]
        %v821 = vld [vmem:[%s1 + $0x138] sm:$0xf]
        %v822 = vld [vmem:[%s1 + $0x13c] sm:$0xf]
        %v823 = vld [vmem:[%s1 + $0x140] sm:$0xf]
        %v824 = vld [vmem:[%s1 + $0x144] sm:$0xf]
        %v825 = vld [vmem:[%s1 + $0x148] sm:$0xf]
        %v826 = vld [vmem:[%s1 + $0x14c] sm:$0xf]
        %v827 = vld [vmem:[%s1 + $0x150] sm:$0xf]
        %v828 = vld [vmem:[%s1 + $0x154] sm:$0xf]
        %v829 = vld [vmem:[%s1 + $0x158] sm:$0xf]
        %v830 = vld [vmem:[%s1 + $0x15c] sm:$0xf]
        %v831 = vld [vmem:[%s1 + $0x160] sm:$0xf]
        %v832 = vld [vmem:[%s1 + $0x164] sm:$0xf]
        %v833 = vld [vmem:[%s1 + $0x168] sm:$0xf]
        %v834 = vld [vmem:[%s1 + $0x16c] sm:$0xf]
        %v835 = vld [vmem:[%s1 + $0x170] sm:$0xf]
        %v836 = vld [vmem:[%s1 + $0x174] sm:$0xf]
        %v837 = vld [vmem:[%s1 + $0x178] sm:$0xf]
        %v838 = vld [vmem:[%s1 + $0x17c] sm:$0xf]
        %v839 = vld [vmem:[%s1 + $0x180] sm:$0xf]
        %v840 = vld [vmem:[%s1 + $0x184] sm:$0xf]
        %v841 = vld [vmem:[%s1 + $0x188] sm:$0xf]
        %v842 = vld [vmem:[%s1 + $0x18c] sm:$0xf]
        %v843 = vld [vmem:[%s1 + $0x190] sm:$0xf]
        %v844 = vld [vmem:[%s1 + $0x194] sm:$0xf]
        %v845 = vld [vmem:[%s1 + $0x198] sm:$0xf]
        %v846 = vld [vmem:[%s1 + $0x19c] sm:$0xf]
        %v847 = vld [vmem:[%s1 + $0x1a0] sm:$0xf]
        %v848 = vld [vmem:[%s1 + $0x1a4] sm:$0xf]
        %v849 = vld [vmem:[%s1 + $0x1a8] sm:$0xf]
        %v850 = vld [vmem:[%s1 + $0x1ac] sm:$0xf]
        %v851 = vld [vmem:[%s1 + $0x1b0] sm:$0xf]
        %v852 = vld [vmem:[%s1 + $0x1b4] sm:$0xf]
        %v853 = vld [vmem:[%s1 + $0x1b8] sm:$0xf]
        %v854 = vld [vmem:[%s1 + $0x1bc] sm:$0xf]
        %v855 = vld [vmem:[%s1 + $0x1c0] sm:$0xf]
        %v856 = vld [vmem:[%s1 + $0x1c4] sm:$0xf]
        %v857 = vld [vmem:[%s1 + $0x1c8] sm:$0xf]
        %v858 = vld [vmem:[%s1 + $0x1cc] sm:$0xf]
        %v859 = vld [vmem:[%s1 + $0x1d0] sm:$0xf]
        %v860 = vld [vmem:[%s1 + $0x1d4] sm:$0xf]
        %v861 = vld [vmem:[%s1 + $0x1d8] sm:$0xf]
        %v862 = vld [vmem:[%s1 + $0x1dc] sm:$0xf]
        %v863 = vld [vmem:[%s1 + $0x1e0] sm:$0xf]
        %v864 = vld [vmem:[%s1 + $0x1e4] sm:$0xf]
        %v865 = vld [vmem:[%s1 + $0x1e8] sm:$0xf]
        %v866 = vld [vmem:[%s1 + $0x1ec] sm:$0xf]
        %v867 = vld [vmem:[%s1 + $0x1f0] sm:$0xf]
        %v868 = vld [vmem:[%s1 + $0x1f4] sm:$0xf]
        %v869 = vld [vmem:[%s1 + $0x1f8] sm:$0xf]
        %v870 = vld [vmem:[%s1 + $0x1fc] sm:$0xf]
        %v871 = vld [vmem:[%s1 + $0x200] sm:$0xf]
        %v872 = vld [vmem:[%s1 + $0x204] sm:$0xf]
        %v873 = vld [vmem:[%s1 + $0x208] sm:$0xf]
        %v874 = vld [vmem:[%s1 + $0x20c] sm:$0xf]
        %v875 = vld [vmem:[%s1 + $0x210] sm:$0xf]
        %v876 = vld [vmem:[%s1 + $0x214] sm:$0xf]
        %v877 = vld [vmem:[%s1 + $0x218] sm:$0xf]
        %v878 = vld [vmem:[%s1 + $0x21c] sm:$0xf]
        %v879 = vld [vmem:[%s1 + $0x220] sm:$0xf]
        %v880 = vld [vmem:[%s1 + $0x224] sm:$0xf]
        %v881 = vld [vmem:[%s1 + $0x228] sm:$0xf]
        %v882 = vld [vmem:[%s1 + $0x22c] sm:$0xf]
        %v883 = vld [vmem:[%s1 + $0x230] sm:$0xf]
        %v884 = vld [vmem:[%s1 + $0x234] sm:$0xf]
        %v885 = vld [vmem:[%s1 + $0x238] sm:$0xf]
        %v886 = vld [vmem:[%s1 + $0x23c] sm:$0xf]
        %v887 = vld [vmem:[%s2] sm:$0x1]
        %v889 = vlaneseq
        %v890 = vshrl.u32 %v889, 7
        %v891 = vsub.s32 0, %v890
        %v892 = vrot.slane %v887, %v891
        %v934 = vunpack.c.l.b16 %v703
        %v935 = vunpack.c.h.b16 %v703
        %v936 = vunpack.c.l.b16 %v704
        %v937 = vunpack.c.h.b16 %v704
        %v938 = vunpack.c.l.b16 %v705
        %v939 = vunpack.c.h.b16 %v705
        %v940 = vunpack.c.l.b16 %v706
        %v941 = vunpack.c.h.b16 %v706
        %v942 = vunpack.c.l.b16 %v707
        %v943 = vunpack.c.l.b16 %v708
        %v944 = vunpack.c.h.b16 %v708
        %v945 = vunpack.c.l.b16 %v709
        %v946 = vunpack.c.h.b16 %v709
        %v947 = vunpack.c.l.b16 %v710
        %v948 = vunpack.c.h.b16 %v710
        %v949 = vunpack.c.l.b16 %v711
        %v950 = vunpack.c.h.b16 %v711
        %v951 = vunpack.c.l.b16 %v712
        %v952 = vunpack.c.l.b16 %v713
        %v953 = vunpack.c.h.b16 %v713
        %v954 = vunpack.c.l.b16 %v714
        %v955 = vunpack.c.h.b16 %v714
        %v956 = vunpack.c.l.b16 %v715
        %v957 = vunpack.c.h.b16 %v715
        %v958 = vunpack.c.l.b16 %v716
        %v959 = vunpack.c.h.b16 %v716
        %v960 = vunpack.c.l.b16 %v717
        %v961 = vunpack.c.l.b16 %v718
        %v962 = vunpack.c.h.b16 %v718
        %v963 = vunpack.c.l.b16 %v719
        %v964 = vunpack.c.h.b16 %v719
        %v965 = vunpack.c.l.b16 %v720
        %v966 = vunpack.c.h.b16 %v720
        %v967 = vunpack.c.l.b16 %v721
        %v968 = vunpack.c.h.b16 %v721
        %v969 = vunpack.c.l.b16 %v722
        %v970 = vunpack.c.l.b16 %v723
        %v971 = vunpack.c.h.b16 %v723
        %v972 = vunpack.c.l.b16 %v724
        %v973 = vunpack.c.h.b16 %v724
        %v974 = vunpack.c.l.b16 %v725
        %v975 = vunpack.c.h.b16 %v725
        %v976 = vunpack.c.l.b16 %v726
        %v977 = vunpack.c.h.b16 %v726
        %v978 = vunpack.c.l.b16 %v727
        %v979 = vunpack.c.l.b16 %v728
        %v980 = vunpack.c.h.b16 %v728
        %v981 = vunpack.c.l.b16 %v729
        %v982 = vunpack.c.h.b16 %v729
        %v983 = vunpack.c.l.b16 %v730
        %v984 = vunpack.c.h.b16 %v730
        %v985 = vunpack.c.l.b16 %v731
        %v986 = vunpack.c.h.b16 %v731
        %v987 = vunpack.c.l.b16 %v732
        %v988 = vunpack.c.l.b16 %v733
        %v989 = vunpack.c.h.b16 %v733
        %v990 = vunpack.c.l.b16 %v734
        %v991 = vunpack.c.h.b16 %v734
        %v992 = vunpack.c.l.b16 %v735
        %v993 = vunpack.c.h.b16 %v735
        %v994 = vunpack.c.l.b16 %v736
        %v995 = vunpack.c.h.b16 %v736
        %v996 = vunpack.c.l.b16 %v737
        %v997 = vunpack.c.l.b16 %v738
        %v998 = vunpack.c.h.b16 %v738
        %v999 = vunpack.c.l.b16 %v739
        %v1000 = vunpack.c.h.b16 %v739
        %v1001 = vunpack.c.l.b16 %v740
        %v1002 = vunpack.c.h.b16 %v740
        %v1003 = vunpack.c.l.b16 %v741
        %v1004 = vunpack.c.h.b16 %v741
        %v1005 = vunpack.c.l.b16 %v742
        %v1006 = vpack.c.b16 %v943, %v934
        %v1007 = vpack.c.b16 %v944, %v935
        %v1008 = vpack.c.b16 %v945, %v936
        %v1009 = vpack.c.b16 %v946, %v937
        %v1010 = vpack.c.b16 %v947, %v938
        %v1011 = vpack.c.b16 %v948, %v939
        %v1012 = vpack.c.b16 %v949, %v940
        %v1013 = vpack.c.b16 %v950, %v941
        %v1014 = vpack.c.b16 %v951, %v942
        %v1015 = vpack.c.b16 %v961, %v952
        %v1016 = vpack.c.b16 %v962, %v953
        %v1017 = vpack.c.b16 %v963, %v954
        %v1018 = vpack.c.b16 %v964, %v955
        %v1019 = vpack.c.b16 %v965, %v956
        %v1020 = vpack.c.b16 %v966, %v957
        %v1021 = vpack.c.b16 %v967, %v958
        %v1022 = vpack.c.b16 %v968, %v959
        %v1023 = vpack.c.b16 %v969, %v960
        %v1024 = vpack.c.b16 %v979, %v970
        %v1025 = vpack.c.b16 %v980, %v971
        %v1026 = vpack.c.b16 %v981, %v972
        %v1027 = vpack.c.b16 %v982, %v973
        %v1028 = vpack.c.b16 %v983, %v974
        %v1029 = vpack.c.b16 %v984, %v975
        %v1030 = vpack.c.b16 %v985, %v976
        %v1031 = vpack.c.b16 %v986, %v977
        %v1032 = vpack.c.b16 %v987, %v978
        %v1033 = vpack.c.b16 %v997, %v988
        %v1034 = vpack.c.b16 %v998, %v989
        %v1035 = vpack.c.b16 %v999, %v990
        %v1036 = vpack.c.b16 %v1000, %v991
        %v1037 = vpack.c.b16 %v1001, %v992
        %v1038 = vpack.c.b16 %v1002, %v993
        %v1039 = vpack.c.b16 %v1003, %v994
        %v1040 = vpack.c.b16 %v1004, %v995
        %v1041 = vpack.c.b16 %v1005, %v996
        %v1222 = vunpack.c.l.b16 %v743
        %v1223 = vunpack.c.l.b16 %v744
        %v1224 = vunpack.c.l.b16 %v745
        %v1225 = vunpack.c.l.b16 %v746
        %v1226 = vunpack.c.l.b16 %v747
        %v1227 = vunpack.c.l.b16 %v748
        %v1228 = vunpack.c.l.b16 %v749
        %v1229 = vunpack.c.l.b16 %v750
        %v1230 = vunpack.c.l.b16 %v751
        %v1231 = vunpack.c.l.b16 %v752
        %v1232 = vunpack.c.l.b16 %v753
        %v1233 = vunpack.c.l.b16 %v754
        %v1234 = vunpack.c.l.b16 %v755
        %v1235 = vunpack.c.l.b16 %v756
        %v1236 = vunpack.c.l.b16 %v757
        %v1237 = vunpack.c.l.b16 %v758
        %v1238 = vunpack.c.l.b16 %v759
        %v1239 = vunpack.c.l.b16 %v760
        %v1240 = vunpack.c.l.b16 %v761
        %v1241 = vunpack.c.l.b16 %v762
        %v1242 = vunpack.c.l.b16 %v763
        %v1243 = vunpack.c.l.b16 %v764
        %v1244 = vunpack.c.l.b16 %v765
        %v1245 = vunpack.c.l.b16 %v766
        %v1246 = vunpack.c.l.b16 %v767
        %v1247 = vunpack.c.l.b16 %v768
        %v1248 = vunpack.c.l.b16 %v769
        %v1249 = vunpack.c.l.b16 %v770
        %v1250 = vunpack.c.l.b16 %v771
        %v1251 = vunpack.c.l.b16 %v772
        %v1252 = vunpack.c.l.b16 %v773
        %v1253 = vunpack.c.l.b16 %v774
        %v1254 = vunpack.c.l.b16 %v775
        %v1255 = vunpack.c.l.b16 %v776
        %v1256 = vunpack.c.l.b16 %v777
        %v1257 = vunpack.c.l.b16 %v778
        %v1258 = vunpack.c.l.b16 %v779
        %v1259 = vunpack.c.l.b16 %v780
        %v1260 = vunpack.c.l.b16 %v781
        %v1261 = vunpack.c.l.b16 %v782
        %v1262 = vunpack.c.l.b16 %v783
        %v1263 = vunpack.c.l.b16 %v784
        %v1264 = vunpack.c.l.b16 %v785
        %v1265 = vunpack.c.l.b16 %v786
        %v1266 = vunpack.c.l.b16 %v787
        %v1267 = vunpack.c.l.b16 %v788
        %v1268 = vunpack.c.l.b16 %v789
        %v1269 = vunpack.c.l.b16 %v790
        %v1270 = vunpack.c.l.b16 %v791
        %v1271 = vunpack.c.l.b16 %v792
        %v1272 = vunpack.c.l.b16 %v793
        %v1273 = vunpack.c.l.b16 %v794
        %v1274 = vunpack.c.l.b16 %v795
        %v1275 = vunpack.c.l.b16 %v796
        %v1276 = vunpack.c.l.b16 %v797
        %v1277 = vunpack.c.l.b16 %v798
        %v1278 = vunpack.c.l.b16 %v799
        %v1279 = vunpack.c.l.b16 %v800
        %v1280 = vunpack.c.l.b16 %v801
        %v1281 = vunpack.c.l.b16 %v802
        %v1282 = vunpack.c.l.b16 %v803
        %v1283 = vunpack.c.l.b16 %v804
        %v1284 = vunpack.c.l.b16 %v805
        %v1285 = vunpack.c.l.b16 %v806
        %v1286 = vunpack.c.l.b16 %v807
        %v1287 = vunpack.c.l.b16 %v808
        %v1288 = vunpack.c.l.b16 %v809
        %v1289 = vunpack.c.l.b16 %v810
        %v1290 = vunpack.c.l.b16 %v811
        %v1291 = vunpack.c.l.b16 %v812
        %v1292 = vunpack.c.l.b16 %v813
        %v1293 = vunpack.c.l.b16 %v814
        %v1294 = vunpack.c.l.b16 %v815
        %v1295 = vunpack.c.l.b16 %v816
        %v1296 = vunpack.c.l.b16 %v817
        %v1297 = vunpack.c.l.b16 %v818
        %v1298 = vunpack.c.l.b16 %v819
        %v1299 = vunpack.c.l.b16 %v820
        %v1300 = vunpack.c.l.b16 %v821
        %v1301 = vunpack.c.l.b16 %v822
        %v1302 = vunpack.c.l.b16 %v823
        %v1303 = vunpack.c.l.b16 %v824
        %v1304 = vunpack.c.l.b16 %v825
        %v1305 = vunpack.c.l.b16 %v826
        %v1306 = vunpack.c.l.b16 %v827
        %v1307 = vunpack.c.l.b16 %v828
        %v1308 = vunpack.c.l.b16 %v829
        %v1309 = vunpack.c.l.b16 %v830
        %v1310 = vunpack.c.l.b16 %v831
        %v1311 = vunpack.c.l.b16 %v832
        %v1312 = vunpack.c.l.b16 %v833
        %v1313 = vunpack.c.l.b16 %v834
        %v1314 = vunpack.c.l.b16 %v835
        %v1315 = vunpack.c.l.b16 %v836
        %v1316 = vunpack.c.l.b16 %v837
        %v1317 = vunpack.c.l.b16 %v838
        %v1318 = vunpack.c.l.b16 %v839
        %v1319 = vunpack.c.l.b16 %v840
        %v1320 = vunpack.c.l.b16 %v841
        %v1321 = vunpack.c.l.b16 %v842
        %v1322 = vunpack.c.l.b16 %v843
        %v1323 = vunpack.c.l.b16 %v844
        %v1324 = vunpack.c.l.b16 %v845
        %v1325 = vunpack.c.l.b16 %v846
        %v1326 = vunpack.c.l.b16 %v847
        %v1327 = vunpack.c.l.b16 %v848
        %v1328 = vunpack.c.l.b16 %v849
        %v1329 = vunpack.c.l.b16 %v850
        %v1330 = vunpack.c.l.b16 %v851
        %v1331 = vunpack.c.l.b16 %v852
        %v1332 = vunpack.c.l.b16 %v853
        %v1333 = vunpack.c.l.b16 %v854
        %v1334 = vunpack.c.l.b16 %v855
        %v1335 = vunpack.c.l.b16 %v856
        %v1336 = vunpack.c.l.b16 %v857
        %v1337 = vunpack.c.l.b16 %v858
        %v1338 = vunpack.c.l.b16 %v859
        %v1339 = vunpack.c.l.b16 %v860
        %v1340 = vunpack.c.l.b16 %v861
        %v1341 = vunpack.c.l.b16 %v862
        %v1342 = vunpack.c.l.b16 %v863
        %v1343 = vunpack.c.l.b16 %v864
        %v1344 = vunpack.c.l.b16 %v865
        %v1345 = vunpack.c.l.b16 %v866
        %v1346 = vunpack.c.l.b16 %v867
        %v1347 = vunpack.c.l.b16 %v868
        %v1348 = vunpack.c.l.b16 %v869
        %v1349 = vunpack.c.l.b16 %v870
        %v1350 = vunpack.c.l.b16 %v871
        %v1351 = vunpack.c.l.b16 %v872
        %v1352 = vunpack.c.l.b16 %v873
        %v1353 = vunpack.c.l.b16 %v874
        %v1354 = vunpack.c.l.b16 %v875
        %v1355 = vunpack.c.l.b16 %v876
        %v1356 = vunpack.c.l.b16 %v877
        %v1357 = vunpack.c.l.b16 %v878
        %v1358 = vunpack.c.l.b16 %v879
        %v1359 = vunpack.c.l.b16 %v880
        %v1360 = vunpack.c.l.b16 %v881
        %v1361 = vunpack.c.l.b16 %v882
        %v1362 = vunpack.c.l.b16 %v883
        %v1363 = vunpack.c.l.b16 %v884
        %v1364 = vunpack.c.l.b16 %v885
        %v1365 = vunpack.c.l.b16 %v886
        %v1366 = vpack.c.b16 %v1223, %v1222
        %v1367 = vpack.c.b16 %v1225, %v1224
        %v1368 = vpack.c.b16 %v1227, %v1226
        %v1369 = vpack.c.b16 %v1229, %v1228
        %v1370 = vpack.c.b16 %v1231, %v1230
        %v1371 = vpack.c.b16 %v1233, %v1232
        %v1372 = vpack.c.b16 %v1235, %v1234
        %v1373 = vpack.c.b16 %v1237, %v1236
        %v1374 = vpack.c.b16 %v1239, %v1238
        %v1375 = vpack.c.b16 %v1241, %v1240
        %v1376 = vpack.c.b16 %v1243, %v1242
        %v1377 = vpack.c.b16 %v1245, %v1244
        %v1378 = vpack.c.b16 %v1247, %v1246
        %v1379 = vpack.c.b16 %v1249, %v1248
        %v1380 = vpack.c.b16 %v1251, %v1250
        %v1381 = vpack.c.b16 %v1253, %v1252
        %v1382 = vpack.c.b16 %v1255, %v1254
        %v1383 = vpack.c.b16 %v1257, %v1256
        %v1384 = vpack.c.b16 %v1259, %v1258
        %v1385 = vpack.c.b16 %v1261, %v1260
        %v1386 = vpack.c.b16 %v1263, %v1262
        %v1387 = vpack.c.b16 %v1265, %v1264
        %v1388 = vpack.c.b16 %v1267, %v1266
        %v1389 = vpack.c.b16 %v1269, %v1268
        %v1390 = vpack.c.b16 %v1271, %v1270
        %v1391 = vpack.c.b16 %v1273, %v1272
        %v1392 = vpack.c.b16 %v1275, %v1274
        %v1393 = vpack.c.b16 %v1277, %v1276
        %v1394 = vpack.c.b16 %v1279, %v1278
        %v1395 = vpack.c.b16 %v1281, %v1280
        %v1396 = vpack.c.b16 %v1283, %v1282
        %v1397 = vpack.c.b16 %v1285, %v1284
        %v1398 = vpack.c.b16 %v1287, %v1286
        %v1399 = vpack.c.b16 %v1289, %v1288
        %v1400 = vpack.c.b16 %v1291, %v1290
        %v1401 = vpack.c.b16 %v1293, %v1292
        %v1402 = vpack.c.b16 %v1295, %v1294
        %v1403 = vpack.c.b16 %v1297, %v1296
        %v1404 = vpack.c.b16 %v1299, %v1298
        %v1405 = vpack.c.b16 %v1301, %v1300
        %v1406 = vpack.c.b16 %v1303, %v1302
        %v1407 = vpack.c.b16 %v1305, %v1304
        %v1408 = vpack.c.b16 %v1307, %v1306
        %v1409 = vpack.c.b16 %v1309, %v1308
        %v1410 = vpack.c.b16 %v1311, %v1310
        %v1411 = vpack.c.b16 %v1313, %v1312
        %v1412 = vpack.c.b16 %v1315, %v1314
        %v1413 = vpack.c.b16 %v1317, %v1316
        %v1414 = vpack.c.b16 %v1319, %v1318
        %v1415 = vpack.c.b16 %v1321, %v1320
        %v1416 = vpack.c.b16 %v1323, %v1322
        %v1417 = vpack.c.b16 %v1325, %v1324
        %v1418 = vpack.c.b16 %v1327, %v1326
        %v1419 = vpack.c.b16 %v1329, %v1328
        %v1420 = vpack.c.b16 %v1331, %v1330
        %v1421 = vpack.c.b16 %v1333, %v1332
        %v1422 = vpack.c.b16 %v1335, %v1334
        %v1423 = vpack.c.b16 %v1337, %v1336
        %v1424 = vpack.c.b16 %v1339, %v1338
        %v1425 = vpack.c.b16 %v1341, %v1340
        %v1426 = vpack.c.b16 %v1343, %v1342
        %v1427 = vpack.c.b16 %v1345, %v1344
        %v1428 = vpack.c.b16 %v1347, %v1346
        %v1429 = vpack.c.b16 %v1349, %v1348
        %v1430 = vpack.c.b16 %v1351, %v1350
        %v1431 = vpack.c.b16 %v1353, %v1352
        %v1432 = vpack.c.b16 %v1355, %v1354
        %v1433 = vpack.c.b16 %v1357, %v1356
        %v1434 = vpack.c.b16 %v1359, %v1358
        %v1435 = vpack.c.b16 %v1361, %v1360
        %v1436 = vpack.c.b16 %v1363, %v1362
        %v1437 = vpack.c.b16 %v1365, %v1364
        %1510 = vmatprep.subr.bf16.mxu0 0
        %1511 = vmatpush1.bf16.msra.mxu0 %v1373
        %1512 = vmatprep.subr.bf16.mxu0 0
        %1513 = vmatpush1.bf16.msra.mxu0 %v1372
        %1514 = vmatprep.subr.bf16.mxu0 0
        %1515 = vmatpush1.bf16.msra.mxu0 %v1371
        %1516 = vmatprep.subr.bf16.mxu0 0
        %1517 = vmatpush1.bf16.msra.mxu0 %v1370
        %1518 = vmatprep.subr.bf16.mxu0 0
        %1519 = vmatpush1.bf16.msra.mxu0 %v1369
        %1520 = vmatprep.subr.bf16.mxu0 0
        %1521 = vmatpush1.bf16.msra.mxu0 %v1368
        %1522 = vmatprep.subr.bf16.mxu0 0
        %1523 = vmatpush1.bf16.msra.mxu0 %v1367
        %1524 = vmatprep.subr.bf16.mxu0 0
        %1525 = vmatpush1.bf16.msra.mxu0 %v1366
        %1526 = vmatprep.subr.bf16.mxu0 0
        %1527 = vmatpush2.bf16.msra.mxu0 %v1381
        %1528 = vmatprep.subr.bf16.mxu0 0
        %1529 = vmatpush2.bf16.msra.mxu0 %v1380
        %1530 = vmatprep.subr.bf16.mxu0 0
        %1531 = vmatpush2.bf16.msra.mxu0 %v1379
        %1532 = vmatprep.subr.bf16.mxu0 0
        %1533 = vmatpush2.bf16.msra.mxu0 %v1378
        %1534 = vmatprep.subr.bf16.mxu0 0
        %1535 = vmatpush2.bf16.msra.mxu0 %v1377
        %1536 = vmatprep.subr.bf16.mxu0 0
        %1537 = vmatpush2.bf16.msra.mxu0 %v1376
        %1538 = vmatprep.subr.bf16.mxu0 0
        %1539 = vmatpush2.bf16.msra.mxu0 %v1375
        %1540 = vmatprep.subr.bf16.mxu0 0
        %1541 = vmatpush2.bf16.msra.mxu0 %v1374
        %1542 = vmatprep.mubr.bf16.mxu0 %v1007
        %1543 = vmatmul.mubr.bf16.gmra.mxu0 %v1006
        %v1544 = vpop.f32.mrf.mxu0
        %v1545 = vadd.f32 %v892, %v1544
        %v1546 = vpop.f32.mrf.mxu0
        %v1547 = vpop.f32.mrf.mxu0
        %v1548 = vadd.f32 %v892, %v1547
        %v1549 = vpop.f32.mrf.mxu0
        %1550 = vmatprep.mubr.bf16.mxu0 %v1016
        %1551 = vmatmul.mubr.bf16.gmra.mxu0 %v1015
        %v1552 = vpop.f32.mrf.mxu0
        %v1553 = vadd.f32 %v892, %v1552
        %v1554 = vpop.f32.mrf.mxu0
        %v1555 = vpop.f32.mrf.mxu0
        %v1556 = vadd.f32 %v892, %v1555
        %v1557 = vpop.f32.mrf.mxu0
        %1558 = vmatprep.mubr.bf16.mxu0 %v1025
        %1559 = vmatmul.mubr.bf16.gmra.mxu0 %v1024
        %v1560 = vpop.f32.mrf.mxu0
        %v1561 = vadd.f32 %v892, %v1560
        %v1562 = vpop.f32.mrf.mxu0
        %v1563 = vpop.f32.mrf.mxu0
        %v1564 = vadd.f32 %v892, %v1563
        %v1565 = vpop.f32.mrf.mxu0
        %1566 = vmatprep.mubr.bf16.mxu0 %v1034
        %1567 = vmatmul.mubr.bf16.gmra.mxu0 %v1033
        %v1568 = vpop.f32.mrf.mxu0
        %v1569 = vadd.f32 %v892, %v1568
        %v1570 = vpop.f32.mrf.mxu0
        %v1571 = vpop.f32.mrf.mxu0
        %v1572 = vadd.f32 %v892, %v1571
        %v1573 = vpop.f32.mrf.mxu0
        %1574 = vdwg.mxu0
        %1575 = vmatprep.subr.bf16.mxu0 0
        %1576 = vmatpush1.bf16.msra.mxu0 %v1389
        %1577 = vmatprep.subr.bf16.mxu0 0
        %1578 = vmatpush1.bf16.msra.mxu0 %v1388
        %1579 = vmatprep.subr.bf16.mxu0 0
        %1580 = vmatpush1.bf16.msra.mxu0 %v1387
        %1581 = vmatprep.subr.bf16.mxu0 0
        %1582 = vmatpush1.bf16.msra.mxu0 %v1386
        %1583 = vmatprep.subr.bf16.mxu0 0
        %1584 = vmatpush1.bf16.msra.mxu0 %v1385
        %1585 = vmatprep.subr.bf16.mxu0 0
        %1586 = vmatpush1.bf16.msra.mxu0 %v1384
        %1587 = vmatprep.subr.bf16.mxu0 0
        %1588 = vmatpush1.bf16.msra.mxu0 %v1383
        %1589 = vmatprep.subr.bf16.mxu0 0
        %1590 = vmatpush1.bf16.msra.mxu0 %v1382
        %1591 = vmatprep.subr.bf16.mxu0 0
        %1592 = vmatpush2.bf16.msra.mxu0 %v1397
        %1593 = vmatprep.subr.bf16.mxu0 0
        %1594 = vmatpush2.bf16.msra.mxu0 %v1396
        %1595 = vmatprep.subr.bf16.mxu0 0
        %1596 = vmatpush2.bf16.msra.mxu0 %v1395
        %1597 = vmatprep.subr.bf16.mxu0 0
        %1598 = vmatpush2.bf16.msra.mxu0 %v1394
        %1599 = vmatprep.subr.bf16.mxu0 0
        %1600 = vmatpush2.bf16.msra.mxu0 %v1393
        %1601 = vmatprep.subr.bf16.mxu0 0
        %1602 = vmatpush2.bf16.msra.mxu0 %v1392
        %1603 = vmatprep.subr.bf16.mxu0 0
        %1604 = vmatpush2.bf16.msra.mxu0 %v1391
        %1605 = vmatprep.subr.bf16.mxu0 0
        %1606 = vmatpush2.bf16.msra.mxu0 %v1390
        %1607 = vmatprep.mubr.bf16.mxu0 %v1009
        %1608 = vmatmul.mubr.bf16.gmra.mxu0 %v1008
        %v1609 = vpop.f32.mrf.mxu0
        %v1610 = vadd.f32 %v1545, %v1609
        %v1611 = vpop.f32.mrf.mxu0
        %v1612 = vpop.f32.mrf.mxu0
        %v1613 = vadd.f32 %v1548, %v1612
        %v1614 = vpop.f32.mrf.mxu0
        %1615 = vmatprep.mubr.bf16.mxu0 %v1018
        %1616 = vmatmul.mubr.bf16.gmra.mxu0 %v1017
        %v1617 = vpop.f32.mrf.mxu0
        %v1618 = vadd.f32 %v1553, %v1617
        %v1619 = vpop.f32.mrf.mxu0
        %v1620 = vpop.f32.mrf.mxu0
        %v1621 = vadd.f32 %v1556, %v1620
        %v1622 = vpop.f32.mrf.mxu0
        %1623 = vmatprep.mubr.bf16.mxu0 %v1027
        %1624 = vmatmul.mubr.bf16.gmra.mxu0 %v1026
        %v1625 = vpop.f32.mrf.mxu0
        %v1626 = vadd.f32 %v1561, %v1625
        %v1627 = vpop.f32.mrf.mxu0
        %v1628 = vpop.f32.mrf.mxu0
        %v1629 = vadd.f32 %v1564, %v1628
        %v1630 = vpop.f32.mrf.mxu0
        %1631 = vmatprep.mubr.bf16.mxu0 %v1036
        %1632 = vmatmul.mubr.bf16.gmra.mxu0 %v1035
        %v1633 = vpop.f32.mrf.mxu0
        %v1634 = vadd.f32 %v1569, %v1633
        %v1635 = vpop.f32.mrf.mxu0
        %v1636 = vpop.f32.mrf.mxu0
        %v1637 = vadd.f32 %v1572, %v1636
        %v1638 = vpop.f32.mrf.mxu0
        %1639 = vdwg.mxu0
        %1640 = vmatprep.subr.bf16.mxu0 0
        %1641 = vmatpush1.bf16.msra.mxu0 %v1405
        %1642 = vmatprep.subr.bf16.mxu0 0
        %1643 = vmatpush1.bf16.msra.mxu0 %v1404
        %1644 = vmatprep.subr.bf16.mxu0 0
        %1645 = vmatpush1.bf16.msra.mxu0 %v1403
        %1646 = vmatprep.subr.bf16.mxu0 0
        %1647 = vmatpush1.bf16.msra.mxu0 %v1402
        %1648 = vmatprep.subr.bf16.mxu0 0
        %1649 = vmatpush1.bf16.msra.mxu0 %v1401
        %1650 = vmatprep.subr.bf16.mxu0 0
        %1651 = vmatpush1.bf16.msra.mxu0 %v1400
        %1652 = vmatprep.subr.bf16.mxu0 0
        %1653 = vmatpush1.bf16.msra.mxu0 %v1399
        %1654 = vmatprep.subr.bf16.mxu0 0
        %1655 = vmatpush1.bf16.msra.mxu0 %v1398
        %1656 = vmatprep.subr.bf16.mxu0 0
        %1657 = vmatpush2.bf16.msra.mxu0 %v1413
        %1658 = vmatprep.subr.bf16.mxu0 0
        %1659 = vmatpush2.bf16.msra.mxu0 %v1412
        %1660 = vmatprep.subr.bf16.mxu0 0
        %1661 = vmatpush2.bf16.msra.mxu0 %v1411
        %1662 = vmatprep.subr.bf16.mxu0 0
        %1663 = vmatpush2.bf16.msra.mxu0 %v1410
        %1664 = vmatprep.subr.bf16.mxu0 0
        %1665 = vmatpush2.bf16.msra.mxu0 %v1409
        %1666 = vmatprep.subr.bf16.mxu0 0
        %1667 = vmatpush2.bf16.msra.mxu0 %v1408
        %1668 = vmatprep.subr.bf16.mxu0 0
        %1669 = vmatpush2.bf16.msra.mxu0 %v1407
        %1670 = vmatprep.subr.bf16.mxu0 0
        %1671 = vmatpush2.bf16.msra.mxu0 %v1406
        %1672 = vmatprep.mubr.bf16.mxu0 %v1011
        %1673 = vmatmul.mubr.bf16.gmra.mxu0 %v1010
        %v1674 = vpop.f32.mrf.mxu0
        %v1675 = vadd.f32 %v1610, %v1674
        %v1676 = vpop.f32.mrf.mxu0
        %v1677 = vpop.f32.mrf.mxu0
        %v1678 = vadd.f32 %v1613, %v1677
        %v1679 = vpop.f32.mrf.mxu0
        %1680 = vmatprep.mubr.bf16.mxu0 %v1020
        %1681 = vmatmul.mubr.bf16.gmra.mxu0 %v1019
        %v1682 = vpop.f32.mrf.mxu0
        %v1683 = vadd.f32 %v1618, %v1682
        %v1684 = vpop.f32.mrf.mxu0
        %v1685 = vpop.f32.mrf.mxu0
        %v1686 = vadd.f32 %v1621, %v1685
        %v1687 = vpop.f32.mrf.mxu0
        %1688 = vmatprep.mubr.bf16.mxu0 %v1029
        %1689 = vmatmul.mubr.bf16.gmra.mxu0 %v1028
        %v1690 = vpop.f32.mrf.mxu0
        %v1691 = vadd.f32 %v1626, %v1690
        %v1692 = vpop.f32.mrf.mxu0
        %v1693 = vpop.f32.mrf.mxu0
        %v1694 = vadd.f32 %v1629, %v1693
        %v1695 = vpop.f32.mrf.mxu0
        %1696 = vmatprep.mubr.bf16.mxu0 %v1038
        %1697 = vmatmul.mubr.bf16.gmra.mxu0 %v1037
        %v1698 = vpop.f32.mrf.mxu0
        %v1699 = vadd.f32 %v1634, %v1698
        %v1700 = vpop.f32.mrf.mxu0
        %v1701 = vpop.f32.mrf.mxu0
        %v1702 = vadd.f32 %v1637, %v1701
        %v1703 = vpop.f32.mrf.mxu0
        %1704 = vdwg.mxu0
        %1705 = vmatprep.subr.bf16.mxu0 0
        %1706 = vmatpush1.bf16.msra.mxu0 %v1421
        %1707 = vmatprep.subr.bf16.mxu0 0
        %1708 = vmatpush1.bf16.msra.mxu0 %v1420
        %1709 = vmatprep.subr.bf16.mxu0 0
        %1710 = vmatpush1.bf16.msra.mxu0 %v1419
        %1711 = vmatprep.subr.bf16.mxu0 0
        %1712 = vmatpush1.bf16.msra.mxu0 %v1418
        %1713 = vmatprep.subr.bf16.mxu0 0
        %1714 = vmatpush1.bf16.msra.mxu0 %v1417
        %1715 = vmatprep.subr.bf16.mxu0 0
        %1716 = vmatpush1.bf16.msra.mxu0 %v1416
        %1717 = vmatprep.subr.bf16.mxu0 0
        %1718 = vmatpush1.bf16.msra.mxu0 %v1415
        %1719 = vmatprep.subr.bf16.mxu0 0
        %1720 = vmatpush1.bf16.msra.mxu0 %v1414
        %1721 = vmatprep.subr.bf16.mxu0 0
        %1722 = vmatpush2.bf16.msra.mxu0 %v1429
        %1723 = vmatprep.subr.bf16.mxu0 0
        %1724 = vmatpush2.bf16.msra.mxu0 %v1428
        %1725 = vmatprep.subr.bf16.mxu0 0
        %1726 = vmatpush2.bf16.msra.mxu0 %v1427
        %1727 = vmatprep.subr.bf16.mxu0 0
        %1728 = vmatpush2.bf16.msra.mxu0 %v1426
        %1729 = vmatprep.subr.bf16.mxu0 0
        %1730 = vmatpush2.bf16.msra.mxu0 %v1425
        %1731 = vmatprep.subr.bf16.mxu0 0
        %1732 = vmatpush2.bf16.msra.mxu0 %v1424
        %1733 = vmatprep.subr.bf16.mxu0 0
        %1734 = vmatpush2.bf16.msra.mxu0 %v1423
        %1735 = vmatprep.subr.bf16.mxu0 0
        %1736 = vmatpush2.bf16.msra.mxu0 %v1422
        %1737 = vmatprep.mubr.bf16.mxu0 %v1013
        %1738 = vmatmul.mubr.bf16.gmra.mxu0 %v1012
        %v1739 = vpop.f32.mrf.mxu0
        %v1740 = vadd.f32 %v1675, %v1739
        %v1741 = vpop.f32.mrf.mxu0
        %v1742 = vpop.f32.mrf.mxu0
        %v1743 = vadd.f32 %v1678, %v1742
        %v1744 = vpop.f32.mrf.mxu0
        %1745 = vmatprep.mubr.bf16.mxu0 %v1022
        %1746 = vmatmul.mubr.bf16.gmra.mxu0 %v1021
        %v1747 = vpop.f32.mrf.mxu0
        %v1748 = vadd.f32 %v1683, %v1747
        %v1749 = vpop.f32.mrf.mxu0
        %v1750 = vpop.f32.mrf.mxu0
        %v1751 = vadd.f32 %v1686, %v1750
        %v1752 = vpop.f32.mrf.mxu0
        %1753 = vmatprep.mubr.bf16.mxu0 %v1031
        %1754 = vmatmul.mubr.bf16.gmra.mxu0 %v1030
        %v1755 = vpop.f32.mrf.mxu0
        %v1756 = vadd.f32 %v1691, %v1755
        %v1757 = vpop.f32.mrf.mxu0
        %v1758 = vpop.f32.mrf.mxu0
        %v1759 = vadd.f32 %v1694, %v1758
        %v1760 = vpop.f32.mrf.mxu0
        %1761 = vmatprep.mubr.bf16.mxu0 %v1040
        %1762 = vmatmul.mubr.bf16.gmra.mxu0 %v1039
        %v1763 = vpop.f32.mrf.mxu0
        %v1764 = vadd.f32 %v1699, %v1763
        %v1765 = vpop.f32.mrf.mxu0
        %v1766 = vpop.f32.mrf.mxu0
        %v1767 = vadd.f32 %v1702, %v1766
        %v1768 = vpop.f32.mrf.mxu0
        %1769 = vdwg.mxu0
        %1770 = vmatprep.subr.bf16.mxu0 0
        %1771 = vmatpush1.bf16.msra.mxu0 %v1437
        %1772 = vmatprep.subr.bf16.mxu0 0
        %1773 = vmatpush1.bf16.msra.mxu0 %v1436
        %1774 = vmatprep.subr.bf16.mxu0 0
        %1775 = vmatpush1.bf16.msra.mxu0 %v1435
        %1776 = vmatprep.subr.bf16.mxu0 0
        %1777 = vmatpush1.bf16.msra.mxu0 %v1434
        %1778 = vmatprep.subr.bf16.mxu0 0
        %1779 = vmatpush1.bf16.msra.mxu0 %v1433
        %1780 = vmatprep.subr.bf16.mxu0 0
        %1781 = vmatpush1.bf16.msra.mxu0 %v1432
        %1782 = vmatprep.subr.bf16.mxu0 0
        %1783 = vmatpush1.bf16.msra.mxu0 %v1431
        %1784 = vmatprep.subr.bf16.mxu0 0
        %1785 = vmatpush1.bf16.msra.mxu0 %v1430
        %1786 = vmatprep.subr.bf16.mxu0 0
        %1787 = vmatpush2.bf16.msra.mxu0 0
        %1788 = vmatprep.subr.bf16.mxu0 0
        %1789 = vmatpush2.bf16.msra.mxu0 0
        %1790 = vmatprep.subr.bf16.mxu0 0
        %1791 = vmatpush2.bf16.msra.mxu0 0
        %1792 = vmatprep.subr.bf16.mxu0 0
        %1793 = vmatpush2.bf16.msra.mxu0 0
        %1794 = vmatprep.subr.bf16.mxu0 0
        %1795 = vmatpush2.bf16.msra.mxu0 0
        %1796 = vmatprep.subr.bf16.mxu0 0
        %1797 = vmatpush2.bf16.msra.mxu0 0
        %1798 = vmatprep.subr.bf16.mxu0 0
        %1799 = vmatpush2.bf16.msra.mxu0 0
        %1800 = vmatprep.subr.bf16.mxu0 0
        %1801 = vmatpush2.bf16.msra.mxu0 0
        %1802 = vmatprep.mubr.bf16.mxu0 0
        %1803 = vmatmul.mubr.bf16.gmra.mxu0 %v1014
        %v1804 = vpop.f32.mrf.mxu0
        %v1805 = vadd.f32 %v1740, %v1804
        %v1806 = vpop.f32.mrf.mxu0
        %v1807 = vpop.f32.mrf.mxu0
        %v1808 = vadd.f32 %v1743, %v1807
        %v1809 = vpop.f32.mrf.mxu0
        %1810 = vmatprep.mubr.bf16.mxu0 0
        %1811 = vmatmul.mubr.bf16.gmra.mxu0 %v1023
        %v1812 = vpop.f32.mrf.mxu0
        %v1813 = vadd.f32 %v1748, %v1812
        %v1814 = vpop.f32.mrf.mxu0
        %v1815 = vpop.f32.mrf.mxu0
        %v1816 = vadd.f32 %v1751, %v1815
        %v1817 = vpop.f32.mrf.mxu0
        %1818 = vmatprep.mubr.bf16.mxu0 0
        %1819 = vmatmul.mubr.bf16.gmra.mxu0 %v1032
        %v1820 = vpop.f32.mrf.mxu0
        %v1821 = vadd.f32 %v1756, %v1820
        %v1822 = vpop.f32.mrf.mxu0
        %v1823 = vpop.f32.mrf.mxu0
        %v1824 = vadd.f32 %v1759, %v1823
        %v1825 = vpop.f32.mrf.mxu0
        %1826 = vmatprep.mubr.bf16.mxu0 0
        %1827 = vmatmul.mubr.bf16.gmra.mxu0 %v1041
        %v1828 = vpop.f32.mrf.mxu0
        %v1829 = vadd.f32 %v1764, %v1828
        %v1830 = vpop.f32.mrf.mxu0
        %v1831 = vpop.f32.mrf.mxu0
        %v1832 = vadd.f32 %v1767, %v1831
        %v1833 = vpop.f32.mrf.mxu0
        %1834 = vdwg.mxu0
        %v1835 = vpack.c.bf16 %v1805, %v1805
        %v1836 = vpack.c.bf16 %v1808, %v1808
        %v1837 = vpack.c.bf16 %v1813, %v1813
        %v1838 = vpack.c.bf16 %v1816, %v1816
        %v1839 = vpack.c.bf16 %v1821, %v1821
        %v1840 = vpack.c.bf16 %v1824, %v1824
        %v1841 = vpack.c.bf16 %v1829, %v1829
        %v1842 = vpack.c.bf16 %v1832, %v1832
        %1843 = vst [vmem:[%s163] sm:$0xf] %v1835
        %1844 = vst [vmem:[%s163 + $0x4] sm:$0xf] %v1836
        %1845 = vst [vmem:[%s163 + $0x8] sm:$0xf] %v1837
        %1846 = vst [vmem:[%s163 + $0xc] sm:$0xf] %v1838
        %1847 = vst [vmem:[%s163 + $0x10] sm:$0xf] %v1839
        %1848 = vst [vmem:[%s163 + $0x14] sm:$0xf] %v1840
        %1849 = vst [vmem:[%s163 + $0x18] sm:$0xf] %v1841
        %1850 = vst [vmem:[%s163 + $0x1c] sm:$0xf] %v1842
        %s1851 = sand.u32 %s93, 1
        %s1852 = scalar_lea.sflag [#allocation4], %s1851
        %s1853 = sand.u32 %s93, 1
        %s1854 = smul.addr %s1853, 32
        %s1855 = scalar_lea.vmem [#allocation3], %s1854
        // Predicated region
        $region33: #{tpu_custom_call.1} parent=31 // pred_check
          %p1856 = pneg %p103
        $region34: #{tpu_custom_call.1} parent=31 // pred_check_branch
          %1858 = sbr.rel (%p1856) target = $region36
        $region35: #{tpu_custom_call.1} parent=31 // pred_region
          %s1860 = ssub.s32 512, 512
          %1861 = vsyncadd %s1852, %s1860
          %s1862 = smul.addr %s17, 8
          %s1863 = smul.addr %s1862, 64
          %s1864 = scalar_lea.hbm %s3, %s1863
          %s1865 = sshll.u32 %s1855, 4
          %s1866 = int_to_ptr.vmem [resolvable:$true] %s1865
          %1871 = dma.vmem_to_hbm [thread:$0]  %s1866, 512, %s1864, %s1852, 64, 64, 4
        $region36: #{tpu_custom_call.1} parent=31 // pred_fallthru
          _
      $region32: #{tpu_custom_call.1} parent=5 // pred_fallthru
        _
      %p1872 = scmp.le.s32.totalorder 2, %s12
      // Predicated region
      $region37: #{tpu_custom_call.1} parent=5 // pred_check
        %p1873 = pneg %p1872
      $region38: #{tpu_custom_call.1} parent=5 // pred_check_branch
        %1875 = sbr.rel (%p1873) target = $region40
      $region39: #{tpu_custom_call.1} parent=5 // pred_region
        %s1876 = ssub.s32 %s12, 2
        // Predicated region
        $region41: #{tpu_custom_call.1} parent=39 // pred_check
          %p1877 = pneg %p109
        $region42: #{tpu_custom_call.1} parent=39 // pred_check_branch
          %1879 = sbr.rel (%p1877) target = $region44
        $region43: #{tpu_custom_call.1} parent=39 // pred_region
          %s1880 = sand.u32 %s94, 1
          %s1881 = scalar_lea.sflag [#allocation4], %s1880
          %s1882 = sand.u32 %s94, 1
          %s1883 = smul.addr %s1882, 32
          %s1884 = scalar_lea.vmem [#allocation3], %s1883
          %1885 = dma.done %s1881, 512
        $region44: #{tpu_custom_call.1} parent=39 // pred_fallthru
          _
      $region40: #{tpu_custom_call.1} parent=5 // pred_fallthru
        _
    $region6: #{tpu_custom_call.1} parent=1 // loop_footer
      %s16 = sadd.s32 1, %s12
    $region7: #{tpu_custom_call.1} parent=1 // loop_footer_branch
      %11 = sbr.rel target = $region3
    $region8: #{tpu_custom_call.1} parent=1 // loop_exit
      _
    %1886 = vsyncpa [#allocation4], 1
    %s1887 = scalar_lea.sflag [#allocation4], 1
    %1888 = vsyncpa %s1887, 1

</llo_original>
